<compile_context>
chip_gen: v7x
topology: tpu7x:2x2x1
jax: 0.10.0
libtpu: 0.0.40
codegen_flags: <defaults>
</compile_context>

<pallas_src>
import jax
import jax.numpy as jnp
import numpy as np
from jax.experimental import pallas as pl
from jax.experimental.pallas import tpu as pltpu


# --------------------------------------------------------------------------- helpers
def _round_up(x, m):
    return ((x + m - 1) // m) * m


def _time_chunk(T, target=128):
    """Largest divisor of T that is <= target (time steps per grid iteration)."""
    best = 1
    for c in range(1, min(T, target) + 1):
        if T % c == 0:
            best = c
    return best


def _unroll_factor(n, target=8):
    """Largest divisor of n that is <= target (fori_loop unroll)."""
    for u in range(min(n, target), 0, -1):
        if n % u == 0:
            return u
    return 1


# --------------------------------------------------------------------------- kernel
def birnn_kernel(x_ref, w_ih_ref, b_gx_ref, w_hh_ref, b_hn_ref, w_fc_ref, b_fc_ref,
                 out_ref, h_ref, gx_ref, hist_ref):
    # x_ref:    (Tc*Bp, I)      f32 input rows for this time chunk (row = t*Bp + b)
    # w_ih_ref: (I, 3*Hp2)      bf16 merged/padded input-gate weights
    # b_gx_ref: (1, 3*Hp2)      f32 folded biases (b_ih + b_hh for r/z, b_ih for n)
    # w_hh_ref: (Hp2, 3*Hp2)    bf16 block-diagonal merged/padded recurrent weights
    # b_hn_ref: (1, Hp2)        f32 hidden-side n-gate bias
    # w_fc_ref: (Hp2, O)        bf16 fc weight (pad rows are zero), b_fc_ref: (1, O)
    # out_ref:  (Tc*Bp, O)      chunk readout
    # h_ref:    (Bp, Hp2)       merged hidden state [h_left | h_right | 0-pad], carried
    # gx_ref:   (Tc*Bp, 3*Hp2)  per-chunk input projections (VMEM scratch)
    # hist_ref: (Tc*Bp, Hp2)    per-chunk hidden-state history (VMEM scratch)
    Bp, Hp2 = h_ref.shape
    Tc = gx_ref.shape[0] // Bp
    Hp4 = 2 * Hp2

    @pl.when(pl.program_id(0) == 0)
    def _init():
        h_ref[...] = jnp.zeros_like(h_ref)

    # Fused input projection for the whole chunk: one row-parallel matmul, no HBM gx.
    gx_ref[...] = (
        jnp.dot(x_ref[...].astype(jnp.bfloat16), w_ih_ref[...],
                preferred_element_type=jnp.float32)
        + b_gx_ref[...]
    )

    # Hoist loop-invariant reads / broadcasts out of the serial step loop.
    w_hh = w_hh_ref[...]
    b_hn = jnp.broadcast_to(b_hn_ref[...], (Bp, Hp2))

    def step(s, h_prev):
        row = pl.multiple_of(s * Bp, Bp)                               # 8-aligned sublane
        gx_s = gx_ref[pl.ds(row, Bp), :]                               # (Bp, 3*Hp2)
        gh = jnp.dot(h_prev.astype(jnp.bfloat16), w_hh,
                     preferred_element_type=jnp.float32)               # (Bp, 3*Hp2)
        rz = jax.nn.sigmoid(gx_s[:, :Hp4] + gh[:, :Hp4])               # (Bp, 2*Hp2)
        r = rz[:, :Hp2]                                                # lane-aligned slabs
        z = rz[:, Hp2:]
        n = jnp.tanh(gx_s[:, Hp4:] + r * (gh[:, Hp4:] + b_hn))         # (Bp, Hp2)
        h_new = (1.0 - z) * n + z * h_prev                             # (Bp, Hp2)
        hist_ref[pl.ds(row, Bp), :] = h_new
        return h_new

    h_ref[...] = jax.lax.fori_loop(0, Tc, step, h_ref[...],
                                   unroll=_unroll_factor(Tc))

    # Chunk-batched FC readout + single bulk store (off the per-step serial path).
    out_ref[...] = (
        jnp.dot(hist_ref[...].astype(jnp.bfloat16), w_fc_ref[...],
                preferred_element_type=jnp.float32)
        + b_fc_ref[...]
    )


def run_birnn(x_rows, kp, Tc, Bp):
    TBp, I = x_rows.shape
    G3 = kp["w_ih"].shape[1]
    Hp2 = kp["w_hh"].shape[0]
    O = kp["w_fc"].shape[1]
    rows_per_chunk = Tc * Bp
    n_chunks = TBp // rows_per_chunk
    return pl.pallas_call(
        birnn_kernel,
        out_shape=jax.ShapeDtypeStruct((TBp, O), jnp.float32),
        grid_spec=pltpu.PrefetchScalarGridSpec(
            num_scalar_prefetch=0,
            grid=(n_chunks,),
            in_specs=[
                pl.BlockSpec((rows_per_chunk, I), lambda c: (c, 0)),
                pl.BlockSpec((I, G3), lambda c: (0, 0)),
                pl.BlockSpec((1, G3), lambda c: (0, 0)),
                pl.BlockSpec((Hp2, G3), lambda c: (0, 0)),
                pl.BlockSpec((1, Hp2), lambda c: (0, 0)),
                pl.BlockSpec((Hp2, O), lambda c: (0, 0)),
                pl.BlockSpec((1, O), lambda c: (0, 0)),
            ],
            out_specs=pl.BlockSpec((rows_per_chunk, O), lambda c: (c, 0)),
            scratch_shapes=[
                pltpu.VMEM((Bp, Hp2), jnp.float32),                 # carried hidden state
                pltpu.VMEM((rows_per_chunk, G3), jnp.float32),      # per-chunk gx
                pltpu.VMEM((rows_per_chunk, Hp2), jnp.float32),     # per-chunk h history
            ],
        ),
        compiler_params=pltpu.CompilerParams(
            dimension_semantics=("arbitrary",),   # sequential carry over time chunks
        ),
    )(x_rows, kp["w_ih"], kp["b_gx"], kp["w_hh"], kp["b_hn"], kp["w_fc"], kp["b_fc"])


# --------------------------------------------------------------------------- wrapper
def birnn_forward(x_bti, kp):
    """Pallas BiRNN forward. x_bti: (B, T, input_size) -> (B, T, output_size)."""
    x = x_bti.astype(jnp.float32)
    B, T, I = x.shape
    O = kp["w_fc"].shape[1]
    Bp = _round_up(B, 8)                     # pad batch to a full sublane group
    Tc = _time_chunk(T, target=128)

    xt = jnp.swapaxes(x, 0, 1)                                   # (T, B, I) time-major
    xt = jnp.pad(xt, ((0, 0), (0, Bp - B), (0, 0)))              # (T, Bp, I)
    x_rows = xt.reshape(T * Bp, I)                               # row = t*Bp + b

    y_rows = run_birnn(x_rows, kp, Tc, Bp)                       # (T*Bp, O)
    yt = y_rows.reshape(T, Bp, O)[:, :B, :]                      # drop batch padding
    return jnp.swapaxes(yt, 0, 1)                                # (B, T, O)


# --------------------------------------------------------------------------- params
def init_torch_like_params(key, input_size, hidden_size, output_size):
    """Parameters in torch.nn.GRU / nn.Linear layout (gate order r, z, n)."""
    ks = jax.random.split(key, 10)
    kg = 1.0 / np.sqrt(hidden_size)
    kf = 1.0 / np.sqrt(2 * hidden_size)

    def u(k, shape, bound):
        return jax.random.uniform(k, shape, jnp.float32, -bound, bound)

    def gru(k0, k1, k2, k3):
        return {
            "w_ih": u(k0, (3 * hidden_size, input_size), kg),
            "w_hh": u(k1, (3 * hidden_size, hidden_size), kg),
            "b_ih": u(k2, (3 * hidden_size,), kg),
            "b_hh": u(k3, (3 * hidden_size,), kg),
        }

    return {
        "left": gru(ks[0], ks[1], ks[2], ks[3]),
        "right": gru(ks[4], ks[5], ks[6], ks[7]),
        "fc_w": u(ks[8], (output_size, 2 * hidden_size), kf),
        "fc_b": u(ks[9], (output_size,), kf),
    }


def prepare_kernel_params(tp, hidden_size):
    """Pack torch-layout params into merged-direction, 128-lane-padded kernel weights.

    Merged hidden layout (width Hp2 = roundup(2H, 128)): [h_left | h_right | zero pad].
    Gate axis (width 3*Hp2): slabs [r | z | n], each slab [left | right | zero pad].
    Pad rows/cols are zero so padded lanes stay exactly 0 through the recurrence.
    """
    H = hidden_size
    H2 = 2 * H
    Hp2 = _round_up(H2, 128)
    pad = Hp2 - H2
    L, R = tp["left"], tp["right"]
    I = L["w_ih"].shape[1]
    O = tp["fc_w"].shape[0]

    def gate_w(w, g):      # (3H, X) torch layout -> (X, H) transposed slice for gate g
        return jnp.transpose(w[g * H:(g + 1) * H, :])

    def gate_b(b, g):
        return b[g * H:(g + 1) * H]

    def slab_cols(lhs, rhs, rows):   # (rows,H),(rows,H) -> (rows,Hp2) with zero lane pad
        return jnp.concatenate([lhs, rhs, jnp.zeros((rows, pad), jnp.float32)], axis=1)

    # w_ih: (I, 3*Hp2)
    w_ih = jnp.concatenate(
        [slab_cols(gate_w(L["w_ih"], g), gate_w(R["w_ih"], g), I) for g in range(3)],
        axis=1)

    # w_hh: (Hp2, 3*Hp2) block-diagonal per direction, zero pad rows/cols.
    def hh_slab(g):
        zero_lr = jnp.zeros((H, H), jnp.float32)
        top = jnp.concatenate([gate_w(L["w_hh"], g), zero_lr,
                               jnp.zeros((H, pad), jnp.float32)], axis=1)   # h_left rows
        bot = jnp.concatenate([zero_lr, gate_w(R["w_hh"], g),
                               jnp.zeros((H, pad), jnp.float32)], axis=1)   # h_right rows
        padr = jnp.zeros((pad, Hp2), jnp.float32)                            # pad rows
        return jnp.concatenate([top, bot, padr], axis=0)                     # (Hp2, Hp2)

    w_hh = jnp.concatenate([hh_slab(g) for g in range(3)], axis=1)

    zero_pad = jnp.zeros((pad,), jnp.float32)

    def slab_bias(bl, br):
        return jnp.concatenate([bl, br, zero_pad])

    # Folded biases: r/z slabs get b_ih + b_hh, n slab gets only b_ih (b_hn stays separate).
    b_gx = jnp.concatenate([
        slab_bias(gate_b(L["b_ih"], 0) + gate_b(L["b_hh"], 0),
                  gate_b(R["b_ih"], 0) + gate_b(R["b_hh"], 0)),
        slab_bias(gate_b(L["b_ih"], 1) + gate_b(L["b_hh"], 1),
                  gate_b(R["b_ih"], 1) + gate_b(R["b_hh"], 1)),
        slab_bias(gate_b(L["b_ih"], 2), gate_b(R["b_ih"], 2)),
    ])[None, :]                                                              # (1, 3*Hp2)
    b_hn = slab_bias(gate_b(L["b_hh"], 2), gate_b(R["b_hh"], 2))[None, :]    # (1, Hp2)

    # fc: (O, 2H) -> (Hp2, O) with zero pad rows, so padded h lanes never contribute.
    w_fc = jnp.concatenate([jnp.transpose(tp["fc_w"]),
                            jnp.zeros((pad, O), jnp.float32)], axis=0)       # (Hp2, O)
    b_fc = tp["fc_b"][None, :]                                               # (1, O)

    return {
        "w_ih": w_ih.astype(jnp.bfloat16),
        "w_hh": w_hh.astype(jnp.bfloat16),
        "b_gx": b_gx,
        "b_hn": b_hn,
        "w_fc": w_fc.astype(jnp.bfloat16),
        "b_fc": b_fc,
    }


# --------------------------------------------------------------------------- references
def birnn_ref_mirrored(x_bti, kp):
    """Plain-JAX scan doing the exact same (bf16-input, f32-accumulate) math as the kernel."""
    x = x_bti.astype(jnp.float32)
    B, T, I = x.shape
    Hp2 = kp["w_hh"].shape[0]
    Hp4 = 2 * Hp2
    xt = jnp.swapaxes(x, 0, 1)                                    # (T, B, I)
    gx = (jnp.dot(xt.reshape(T * B, I).astype(jnp.bfloat16), kp["w_ih"],
                  preferred_element_type=jnp.float32) + kp["b_gx"]).reshape(T, B, -1)

    def step(h, gx_s):
        gh = jnp.dot(h.astype(jnp.bfloat16), kp["w_hh"], preferred_element_type=jnp.float32)
        rz = jax.nn.sigmoid(gx_s[:, :Hp4] + gh[:, :Hp4])
        r, z = rz[:, :Hp2], rz[:, Hp2:]
        n = jnp.tanh(gx_s[:, Hp4:] + r * (gh[:, Hp4:] + kp["b_hn"]))
        h_new = (1.0 - z) * n + z * h
        return h_new, h_new

    _, hs = jax.lax.scan(step, jnp.zeros((B, Hp2), jnp.float32), gx)      # (T, B, Hp2)
    ys = (jnp.dot(hs.reshape(T * B, Hp2).astype(jnp.bfloat16), kp["w_fc"],
                  preferred_element_type=jnp.float32) + kp["b_fc"])
    return jnp.swapaxes(ys.reshape(T, B, -1), 0, 1)                       # (B, T, O)


def _gru_ref_f32(x_bti, w_ih, w_hh, b_ih, b_hh):
    B = x_bti.shape[0]
    H = w_hh.shape[1]
    wih_t, whh_t = w_ih.T, w_hh.T

    def step(h, x_t):
        gx = x_t @ wih_t + b_ih
        gh = h @ whh_t + b_hh
        r = jax.nn.sigmoid(gx[:, :H] + gh[:, :H])
        z = jax.nn.sigmoid(gx[:, H:2 * H] + gh[:, H:2 * H])
        n = jnp.tanh(gx[:, 2 * H:] + r * gh[:, 2 * H:])
        h_new = (1.0 - z) * n + z * h
        return h_new, h_new

    _, hs = jax.lax.scan(step, jnp.zeros((B, H), jnp.float32), jnp.swapaxes(x_bti, 0, 1))
    return jnp.swapaxes(hs, 0, 1)


def birnn_ref_f32(x_bti, tp):
    """Pure f32, per-direction reference matching the PyTorch module semantics."""
    x = x_bti.astype(jnp.float32)
    left = _gru_ref_f32(x, tp["left"]["w_ih"], tp["left"]["w_hh"],
                        tp["left"]["b_ih"], tp["left"]["b_hh"])
    right = _gru_ref_f32(x, tp["right"]["w_ih"], tp["right"]["w_hh"],
                         tp["right"]["b_ih"], tp["right"]["b_hh"])
    cat = jnp.concatenate([left, right], axis=-1)
    return cat @ tp["fc_w"].T + tp["fc_b"]


# --------------------------------------------------------------------------- main
if __name__ == "__main__":
    B, T, INPUT, HIDDEN, OUTPUT = 2, 8, 4, 32, 16

    key = jax.random.PRNGKey(0)
    k_x, k_p = jax.random.split(key)
    x = jax.random.normal(k_x, (B, T, INPUT), jnp.float32)

    torch_params = init_torch_like_params(k_p, INPUT, HIDDEN, OUTPUT)
    kernel_params = prepare_kernel_params(torch_params, HIDDEN)

    birnn = jax.jit(birnn_forward)
    out = jax.block_until_ready(birnn(x, kernel_params))
    assert out.shape == (B, T, OUTPUT), out.shape

    # Tight check vs. plain-JAX scan doing the identical bf16/f32 math.
    ref_tight = jax.block_until_ready(birnn_ref_mirrored(x, kernel_params))
    np.testing.assert_allclose(np.asarray(out), np.asarray(ref_tight), rtol=2e-3, atol=2e-3)

    # Loose check vs. pure-f32 per-direction PyTorch-semantics reference
    # (validates weight packing; tolerance absorbs bf16 weight/state rounding).
    ref_f32 = jax.block_until_ready(birnn_ref_f32(x, torch_params))
    np.testing.assert_allclose(np.asarray(out), np.asarray(ref_f32), rtol=2e-2, atol=2e-2)

    print("KERNEL_OK")
</pallas_src>

<mosaic_0001>
module attributes {stable_mosaic.version = 11 : i64} {
  func.func @birnn_kernel(%arg0: i32, %arg1: memref<64x4xf32, #tpu.memory_space<vmem>>, %arg2: memref<4x384xbf16, #tpu.memory_space<vmem>>, %arg3: memref<1x384xf32, #tpu.memory_space<vmem>>, %arg4: memref<128x384xbf16, #tpu.memory_space<vmem>>, %arg5: memref<1x128xf32, #tpu.memory_space<vmem>>, %arg6: memref<128x16xbf16, #tpu.memory_space<vmem>>, %arg7: memref<1x16xf32, #tpu.memory_space<vmem>>, %arg8: memref<64x16xf32, #tpu.memory_space<vmem>>, %arg9: memref<8x128xf32, #tpu.memory_space<vmem>>, %arg10: memref<64x384xf32, #tpu.memory_space<vmem>>, %arg11: memref<64x128xf32, #tpu.memory_space<vmem>>) attributes {dimension_semantics = [#tpu.dimension_semantics<arbitrary>], iteration_bounds = array<i64: 1>, scalar_prefetch = 0 : i64, scratch_operands = 3 : i64, tpu.core_type = #tpu.core_type<tc>, window_params = [{transform_indices = @transform_0, window_bounds = array<i64: 64, 4>}, {pipeline_mode = #tpu.pipeline_mode<synchronous>, transform_indices = @transform_1, window_bounds = array<i64: 4, 384>}, {pipeline_mode = #tpu.pipeline_mode<synchronous>, transform_indices = @transform_2, window_bounds = array<i64: 1, 384>}, {pipeline_mode = #tpu.pipeline_mode<synchronous>, transform_indices = @transform_3, window_bounds = array<i64: 128, 384>}, {pipeline_mode = #tpu.pipeline_mode<synchronous>, transform_indices = @transform_4, window_bounds = array<i64: 1, 128>}, {pipeline_mode = #tpu.pipeline_mode<synchronous>, transform_indices = @transform_5, window_bounds = array<i64: 128, 16>}, {pipeline_mode = #tpu.pipeline_mode<synchronous>, transform_indices = @transform_6, window_bounds = array<i64: 1, 16>}, {transform_indices = @transform_7, window_bounds = array<i64: 64, 16>}]} {
    %c0_i32 = arith.constant 0 : i32
    %0 = arith.cmpi eq, %arg0, %c0_i32 : i32
    %1 = arith.extui %0 : i1 to i32
    %c0_i32_0 = arith.constant 0 : i32
    %2 = arith.cmpi ne, %1, %c0_i32_0 : i32
    scf.if %2 {
      %cst_74 = arith.constant 0.000000e+00 : f32
      %257 = vector.broadcast %cst_74 : f32 to vector<8x128xf32>
      %c0_75 = arith.constant 0 : index
      %c0_76 = arith.constant 0 : index
      %258 = vector.load %arg9[%c0_75, %c0_76] : memref<8x128xf32, #tpu.memory_space<vmem>>, vector<8x128xf32>
      tpu.vector_store %arg9[%c0_75, %c0_76], %257 {strides = array<i32>} : memref<8x128xf32, #tpu.memory_space<vmem>>, vector<8x128xf32>,
    } else {
    }
    %c0 = arith.constant 0 : index
    %c0_1 = arith.constant 0 : index
    %3 = vector.load %arg1[%c0, %c0_1] : memref<64x4xf32, #tpu.memory_space<vmem>>, vector<64x4xf32>
    %4 = arith.truncf %3 : vector<64x4xf32> to vector<64x4xbf16>
    %c0_2 = arith.constant 0 : index
    %c0_3 = arith.constant 0 : index
    %5 = vector.load %arg2[%c0_2, %c0_3] : memref<4x384xbf16, #tpu.memory_space<vmem>>, vector<4x384xbf16>
    %cst = arith.constant dense<0.000000e+00> : vector<64x384xf32>
    %6 = tpu.matmul %4, %5, %cst {dimension_numbers = #tpu.dot_dimension_numbers<[1], [0], [0], [1], [0, 0, 1, 1], [], []>} : vector<64x4xbf16>, vector<4x384xbf16>, vector<64x384xf32> -> vector<64x384xf32>
    %c0_4 = arith.constant 0 : index
    %c0_5 = arith.constant 0 : index
    %7 = vector.load %arg3[%c0_4, %c0_5] : memref<1x384xf32, #tpu.memory_space<vmem>>, vector<1x384xf32>
    %8 = vector.broadcast %7 : vector<1x384xf32> to vector<64x384xf32>
    %9 = arith.addf %6, %8 : vector<64x384xf32>
    %c0_6 = arith.constant 0 : index
    %c0_7 = arith.constant 0 : index
    %10 = vector.load %arg10[%c0_6, %c0_7] : memref<64x384xf32, #tpu.memory_space<vmem>>, vector<64x384xf32>
    tpu.vector_store %arg10[%c0_6, %c0_7], %9 {strides = array<i32>} : memref<64x384xf32, #tpu.memory_space<vmem>>, vector<64x384xf32>,
    %c0_8 = arith.constant 0 : index
    %c0_9 = arith.constant 0 : index
    %11 = vector.load %arg4[%c0_8, %c0_9] : memref<128x384xbf16, #tpu.memory_space<vmem>>, vector<128x384xbf16>
    %c0_10 = arith.constant 0 : index
    %c0_11 = arith.constant 0 : index
    %12 = vector.load %arg5[%c0_10, %c0_11] : memref<1x128xf32, #tpu.memory_space<vmem>>, vector<1x128xf32>
    %13 = vector.shape_cast %12 : vector<1x128xf32> to vector<1x128xf32>
    %14 = vector.broadcast %13 : vector<1x128xf32> to vector<8x128xf32>
    %c0_12 = arith.constant 0 : index
    %c0_13 = arith.constant 0 : index
    %15 = vector.load %arg9[%c0_12, %c0_13] : memref<8x128xf32, #tpu.memory_space<vmem>>, vector<8x128xf32>
    %c0_i32_14 = arith.constant 0 : i32
    %c8_i32 = arith.constant 8 : i32
    %16 = arith.muli %c0_i32_14, %c8_i32 : i32
    %17 = tpu.assume_multiple %16, 8 : i32
    %18 = arith.index_cast %17 : i32 to index
    %c0_15 = arith.constant 0 : index
    %19 = vector.load %arg10[%18, %c0_15] : memref<64x384xf32, #tpu.memory_space<vmem>>, vector<8x384xf32>
    %20 = arith.truncf %15 : vector<8x128xf32> to vector<8x128xbf16>
    %cst_16 = arith.constant dense<0.000000e+00> : vector<8x384xf32>
    %21 = tpu.matmul %20, %11, %cst_16 {dimension_numbers = #tpu.dot_dimension_numbers<[1], [0], [0], [1], [0, 0, 1, 1], [], []>} : vector<8x128xbf16>, vector<128x384xbf16>, vector<8x384xf32> -> vector<8x384xf32>
    %22 = vector.extract_strided_slice %19 {offsets = [0, 0], sizes = [8, 256], strides = [1, 1]} : vector<8x384xf32> to vector<8x256xf32>
    %23 = vector.extract_strided_slice %21 {offsets = [0, 0], sizes = [8, 256], strides = [1, 1]} : vector<8x384xf32> to vector<8x256xf32>
    %24 = arith.addf %22, %23 : vector<8x256xf32>
    %25 = arith.negf %24 : vector<8x256xf32>
    %26 = math.exp %25 : vector<8x256xf32>
    %cst_17 = arith.constant 1.000000e+00 : f32
    %27 = vector.broadcast %cst_17 : f32 to vector<8x256xf32>
    %28 = arith.addf %27, %26 : vector<8x256xf32>
    %29 = arith.divf %27, %28 : vector<8x256xf32>
    %30 = vector.extract_strided_slice %29 {offsets = [0, 0], sizes = [8, 128], strides = [1, 1]} : vector<8x256xf32> to vector<8x128xf32>
    %31 = vector.extract_strided_slice %29 {offsets = [0, 128], sizes = [8, 128], strides = [1, 1]} : vector<8x256xf32> to vector<8x128xf32>
    %32 = vector.extract_strided_slice %19 {offsets = [0, 256], sizes = [8, 128], strides = [1, 1]} : vector<8x384xf32> to vector<8x128xf32>
    %33 = vector.extract_strided_slice %21 {offsets = [0, 256], sizes = [8, 128], strides = [1, 1]} : vector<8x384xf32> to vector<8x128xf32>
    %34 = arith.addf %33, %14 : vector<8x128xf32>
    %35 = arith.mulf %30, %34 : vector<8x128xf32>
    %36 = arith.addf %32, %35 : vector<8x128xf32>
    %37 = math.tanh %36 : vector<8x128xf32>
    %cst_18 = arith.constant 1.000000e+00 : f32
    %38 = vector.broadcast %cst_18 : f32 to vector<8x128xf32>
    %39 = arith.subf %38, %31 : vector<8x128xf32>
    %40 = arith.mulf %39, %37 : vector<8x128xf32>
    %41 = arith.mulf %31, %15 : vector<8x128xf32>
    %42 = arith.addf %40, %41 : vector<8x128xf32>
    %43 = arith.index_cast %17 : i32 to index
    %c0_19 = arith.constant 0 : index
    %44 = vector.load %arg11[%43, %c0_19] : memref<64x128xf32, #tpu.memory_space<vmem>>, vector<8x128xf32>
    tpu.vector_store %arg11[%43, %c0_19], %42 {strides = array<i32>} : memref<64x128xf32, #tpu.memory_space<vmem>>, vector<8x128xf32>,
    %c1_i32 = arith.constant 1 : i32
    %c8_i32_20 = arith.constant 8 : i32
    %45 = arith.muli %c1_i32, %c8_i32_20 : i32
    %46 = tpu.assume_multiple %45, 8 : i32
    %47 = arith.index_cast %46 : i32 to index
    %c0_21 = arith.constant 0 : index
    %48 = vector.load %arg10[%47, %c0_21] : memref<64x384xf32, #tpu.memory_space<vmem>>, vector<8x384xf32>
    %49 = arith.truncf %42 : vector<8x128xf32> to vector<8x128xbf16>
    %cst_22 = arith.constant dense<0.000000e+00> : vector<8x384xf32>
    %50 = tpu.matmul %49, %11, %cst_22 {dimension_numbers = #tpu.dot_dimension_numbers<[1], [0], [0], [1], [0, 0, 1, 1], [], []>} : vector<8x128xbf16>, vector<128x384xbf16>, vector<8x384xf32> -> vector<8x384xf32>
    %51 = vector.extract_strided_slice %48 {offsets = [0, 0], sizes = [8, 256], strides = [1, 1]} : vector<8x384xf32> to vector<8x256xf32>
    %52 = vector.extract_strided_slice %50 {offsets = [0, 0], sizes = [8, 256], strides = [1, 1]} : vector<8x384xf32> to vector<8x256xf32>
    %53 = arith.addf %51, %52 : vector<8x256xf32>
    %54 = arith.negf %53 : vector<8x256xf32>
    %55 = math.exp %54 : vector<8x256xf32>
    %cst_23 = arith.constant 1.000000e+00 : f32
    %56 = vector.broadcast %cst_23 : f32 to vector<8x256xf32>
    %57 = arith.addf %56, %55 : vector<8x256xf32>
    %58 = arith.divf %56, %57 : vector<8x256xf32>
    %59 = vector.extract_strided_slice %58 {offsets = [0, 0], sizes = [8, 128], strides = [1, 1]} : vector<8x256xf32> to vector<8x128xf32>
    %60 = vector.extract_strided_slice %58 {offsets = [0, 128], sizes = [8, 128], strides = [1, 1]} : vector<8x256xf32> to vector<8x128xf32>
    %61 = vector.extract_strided_slice %48 {offsets = [0, 256], sizes = [8, 128], strides = [1, 1]} : vector<8x384xf32> to vector<8x128xf32>
    %62 = vector.extract_strided_slice %50 {offsets = [0, 256], sizes = [8, 128], strides = [1, 1]} : vector<8x384xf32> to vector<8x128xf32>
    %63 = arith.addf %62, %14 : vector<8x128xf32>
    %64 = arith.mulf %59, %63 : vector<8x128xf32>
    %65 = arith.addf %61, %64 : vector<8x128xf32>
    %66 = math.tanh %65 : vector<8x128xf32>
    %cst_24 = arith.constant 1.000000e+00 : f32
    %67 = vector.broadcast %cst_24 : f32 to vector<8x128xf32>
    %68 = arith.subf %67, %60 : vector<8x128xf32>
    %69 = arith.mulf %68, %66 : vector<8x128xf32>
    %70 = arith.mulf %60, %42 : vector<8x128xf32>
    %71 = arith.addf %69, %70 : vector<8x128xf32>
    %72 = arith.index_cast %46 : i32 to index
    %c0_25 = arith.constant 0 : index
    %73 = vector.load %arg11[%72, %c0_25] : memref<64x128xf32, #tpu.memory_space<vmem>>, vector<8x128xf32>
    tpu.vector_store %arg11[%72, %c0_25], %71 {strides = array<i32>} : memref<64x128xf32, #tpu.memory_space<vmem>>, vector<8x128xf32>,
    %c2_i32 = arith.constant 2 : i32
    %c8_i32_26 = arith.constant 8 : i32
    %74 = arith.muli %c2_i32, %c8_i32_26 : i32
    %75 = tpu.assume_multiple %74, 8 : i32
    %76 = arith.index_cast %75 : i32 to index
    %c0_27 = arith.constant 0 : index
    %77 = vector.load %arg10[%76, %c0_27] : memref<64x384xf32, #tpu.memory_space<vmem>>, vector<8x384xf32>
    %78 = arith.truncf %71 : vector<8x128xf32> to vector<8x128xbf16>
    %cst_28 = arith.constant dense<0.000000e+00> : vector<8x384xf32>
    %79 = tpu.matmul %78, %11, %cst_28 {dimension_numbers = #tpu.dot_dimension_numbers<[1], [0], [0], [1], [0, 0, 1, 1], [], []>} : vector<8x128xbf16>, vector<128x384xbf16>, vector<8x384xf32> -> vector<8x384xf32>
    %80 = vector.extract_strided_slice %77 {offsets = [0, 0], sizes = [8, 256], strides = [1, 1]} : vector<8x384xf32> to vector<8x256xf32>
    %81 = vector.extract_strided_slice %79 {offsets = [0, 0], sizes = [8, 256], strides = [1, 1]} : vector<8x384xf32> to vector<8x256xf32>
    %82 = arith.addf %80, %81 : vector<8x256xf32>
    %83 = arith.negf %82 : vector<8x256xf32>
    %84 = math.exp %83 : vector<8x256xf32>
    %cst_29 = arith.constant 1.000000e+00 : f32
    %85 = vector.broadcast %cst_29 : f32 to vector<8x256xf32>
    %86 = arith.addf %85, %84 : vector<8x256xf32>
    %87 = arith.divf %85, %86 : vector<8x256xf32>
    %88 = vector.extract_strided_slice %87 {offsets = [0, 0], sizes = [8, 128], strides = [1, 1]} : vector<8x256xf32> to vector<8x128xf32>
    %89 = vector.extract_strided_slice %87 {offsets = [0, 128], sizes = [8, 128], strides = [1, 1]} : vector<8x256xf32> to vector<8x128xf32>
    %90 = vector.extract_strided_slice %77 {offsets = [0, 256], sizes = [8, 128], strides = [1, 1]} : vector<8x384xf32> to vector<8x128xf32>
    %91 = vector.extract_strided_slice %79 {offsets = [0, 256], sizes = [8, 128], strides = [1, 1]} : vector<8x384xf32> to vector<8x128xf32>
    %92 = arith.addf %91, %14 : vector<8x128xf32>
    %93 = arith.mulf %88, %92 : vector<8x128xf32>
    %94 = arith.addf %90, %93 : vector<8x128xf32>
    %95 = math.tanh %94 : vector<8x128xf32>
    %cst_30 = arith.constant 1.000000e+00 : f32
    %96 = vector.broadcast %cst_30 : f32 to vector<8x128xf32>
    %97 = arith.subf %96, %89 : vector<8x128xf32>
    %98 = arith.mulf %97, %95 : vector<8x128xf32>
    %99 = arith.mulf %89, %71 : vector<8x128xf32>
    %100 = arith.addf %98, %99 : vector<8x128xf32>
    %101 = arith.index_cast %75 : i32 to index
    %c0_31 = arith.constant 0 : index
    %102 = vector.load %arg11[%101, %c0_31] : memref<64x128xf32, #tpu.memory_space<vmem>>, vector<8x128xf32>
    tpu.vector_store %arg11[%101, %c0_31], %100 {strides = array<i32>} : memref<64x128xf32, #tpu.memory_space<vmem>>, vector<8x128xf32>,
    %c3_i32 = arith.constant 3 : i32
    %c8_i32_32 = arith.constant 8 : i32
    %103 = arith.muli %c3_i32, %c8_i32_32 : i32
    %104 = tpu.assume_multiple %103, 8 : i32
    %105 = arith.index_cast %104 : i32 to index
    %c0_33 = arith.constant 0 : index
    %106 = vector.load %arg10[%105, %c0_33] : memref<64x384xf32, #tpu.memory_space<vmem>>, vector<8x384xf32>
    %107 = arith.truncf %100 : vector<8x128xf32> to vector<8x128xbf16>
    %cst_34 = arith.constant dense<0.000000e+00> : vector<8x384xf32>
    %108 = tpu.matmul %107, %11, %cst_34 {dimension_numbers = #tpu.dot_dimension_numbers<[1], [0], [0], [1], [0, 0, 1, 1], [], []>} : vector<8x128xbf16>, vector<128x384xbf16>, vector<8x384xf32> -> vector<8x384xf32>
    %109 = vector.extract_strided_slice %106 {offsets = [0, 0], sizes = [8, 256], strides = [1, 1]} : vector<8x384xf32> to vector<8x256xf32>
    %110 = vector.extract_strided_slice %108 {offsets = [0, 0], sizes = [8, 256], strides = [1, 1]} : vector<8x384xf32> to vector<8x256xf32>
    %111 = arith.addf %109, %110 : vector<8x256xf32>
    %112 = arith.negf %111 : vector<8x256xf32>
    %113 = math.exp %112 : vector<8x256xf32>
    %cst_35 = arith.constant 1.000000e+00 : f32
    %114 = vector.broadcast %cst_35 : f32 to vector<8x256xf32>
    %115 = arith.addf %114, %113 : vector<8x256xf32>
    %116 = arith.divf %114, %115 : vector<8x256xf32>
    %117 = vector.extract_strided_slice %116 {offsets = [0, 0], sizes = [8, 128], strides = [1, 1]} : vector<8x256xf32> to vector<8x128xf32>
    %118 = vector.extract_strided_slice %116 {offsets = [0, 128], sizes = [8, 128], strides = [1, 1]} : vector<8x256xf32> to vector<8x128xf32>
    %119 = vector.extract_strided_slice %106 {offsets = [0, 256], sizes = [8, 128], strides = [1, 1]} : vector<8x384xf32> to vector<8x128xf32>
    %120 = vector.extract_strided_slice %108 {offsets = [0, 256], sizes = [8, 128], strides = [1, 1]} : vector<8x384xf32> to vector<8x128xf32>
    %121 = arith.addf %120, %14 : vector<8x128xf32>
    %122 = arith.mulf %117, %121 : vector<8x128xf32>
    %123 = arith.addf %119, %122 : vector<8x128xf32>
    %124 = math.tanh %123 : vector<8x128xf32>
    %cst_36 = arith.constant 1.000000e+00 : f32
    %125 = vector.broadcast %cst_36 : f32 to vector<8x128xf32>
    %126 = arith.subf %125, %118 : vector<8x128xf32>
    %127 = arith.mulf %126, %124 : vector<8x128xf32>
    %128 = arith.mulf %118, %100 : vector<8x128xf32>
    %129 = arith.addf %127, %128 : vector<8x128xf32>
    %130 = arith.index_cast %104 : i32 to index
    %c0_37 = arith.constant 0 : index
    %131 = vector.load %arg11[%130, %c0_37] : memref<64x128xf32, #tpu.memory_space<vmem>>, vector<8x128xf32>
    tpu.vector_store %arg11[%130, %c0_37], %129 {strides = array<i32>} : memref<64x128xf32, #tpu.memory_space<vmem>>, vector<8x128xf32>,
    %c4_i32 = arith.constant 4 : i32
    %c8_i32_38 = arith.constant 8 : i32
    %132 = arith.muli %c4_i32, %c8_i32_38 : i32
    %133 = tpu.assume_multiple %132, 8 : i32
    %134 = arith.index_cast %133 : i32 to index
    %c0_39 = arith.constant 0 : index
    %135 = vector.load %arg10[%134, %c0_39] : memref<64x384xf32, #tpu.memory_space<vmem>>, vector<8x384xf32>
    %136 = arith.truncf %129 : vector<8x128xf32> to vector<8x128xbf16>
    %cst_40 = arith.constant dense<0.000000e+00> : vector<8x384xf32>
    %137 = tpu.matmul %136, %11, %cst_40 {dimension_numbers = #tpu.dot_dimension_numbers<[1], [0], [0], [1], [0, 0, 1, 1], [], []>} : vector<8x128xbf16>, vector<128x384xbf16>, vector<8x384xf32> -> vector<8x384xf32>
    %138 = vector.extract_strided_slice %135 {offsets = [0, 0], sizes = [8, 256], strides = [1, 1]} : vector<8x384xf32> to vector<8x256xf32>
    %139 = vector.extract_strided_slice %137 {offsets = [0, 0], sizes = [8, 256], strides = [1, 1]} : vector<8x384xf32> to vector<8x256xf32>
    %140 = arith.addf %138, %139 : vector<8x256xf32>
    %141 = arith.negf %140 : vector<8x256xf32>
    %142 = math.exp %141 : vector<8x256xf32>
    %cst_41 = arith.constant 1.000000e+00 : f32
    %143 = vector.broadcast %cst_41 : f32 to vector<8x256xf32>
    %144 = arith.addf %143, %142 : vector<8x256xf32>
    %145 = arith.divf %143, %144 : vector<8x256xf32>
    %146 = vector.extract_strided_slice %145 {offsets = [0, 0], sizes = [8, 128], strides = [1, 1]} : vector<8x256xf32> to vector<8x128xf32>
    %147 = vector.extract_strided_slice %145 {offsets = [0, 128], sizes = [8, 128], strides = [1, 1]} : vector<8x256xf32> to vector<8x128xf32>
    %148 = vector.extract_strided_slice %135 {offsets = [0, 256], sizes = [8, 128], strides = [1, 1]} : vector<8x384xf32> to vector<8x128xf32>
    %149 = vector.extract_strided_slice %137 {offsets = [0, 256], sizes = [8, 128], strides = [1, 1]} : vector<8x384xf32> to vector<8x128xf32>
    %150 = arith.addf %149, %14 : vector<8x128xf32>
    %151 = arith.mulf %146, %150 : vector<8x128xf32>
    %152 = arith.addf %148, %151 : vector<8x128xf32>
    %153 = math.tanh %152 : vector<8x128xf32>
    %cst_42 = arith.constant 1.000000e+00 : f32
    %154 = vector.broadcast %cst_42 : f32 to vector<8x128xf32>
    %155 = arith.subf %154, %147 : vector<8x128xf32>
    %156 = arith.mulf %155, %153 : vector<8x128xf32>
    %157 = arith.mulf %147, %129 : vector<8x128xf32>
    %158 = arith.addf %156, %157 : vector<8x128xf32>
    %159 = arith.index_cast %133 : i32 to index
    %c0_43 = arith.constant 0 : index
    %160 = vector.load %arg11[%159, %c0_43] : memref<64x128xf32, #tpu.memory_space<vmem>>, vector<8x128xf32>
    tpu.vector_store %arg11[%159, %c0_43], %158 {strides = array<i32>} : memref<64x128xf32, #tpu.memory_space<vmem>>, vector<8x128xf32>,
    %c5_i32 = arith.constant 5 : i32
    %c8_i32_44 = arith.constant 8 : i32
    %161 = arith.muli %c5_i32, %c8_i32_44 : i32
    %162 = tpu.assume_multiple %161, 8 : i32
    %163 = arith.index_cast %162 : i32 to index
    %c0_45 = arith.constant 0 : index
    %164 = vector.load %arg10[%163, %c0_45] : memref<64x384xf32, #tpu.memory_space<vmem>>, vector<8x384xf32>
    %165 = arith.truncf %158 : vector<8x128xf32> to vector<8x128xbf16>
    %cst_46 = arith.constant dense<0.000000e+00> : vector<8x384xf32>
    %166 = tpu.matmul %165, %11, %cst_46 {dimension_numbers = #tpu.dot_dimension_numbers<[1], [0], [0], [1], [0, 0, 1, 1], [], []>} : vector<8x128xbf16>, vector<128x384xbf16>, vector<8x384xf32> -> vector<8x384xf32>
    %167 = vector.extract_strided_slice %164 {offsets = [0, 0], sizes = [8, 256], strides = [1, 1]} : vector<8x384xf32> to vector<8x256xf32>
    %168 = vector.extract_strided_slice %166 {offsets = [0, 0], sizes = [8, 256], strides = [1, 1]} : vector<8x384xf32> to vector<8x256xf32>
    %169 = arith.addf %167, %168 : vector<8x256xf32>
    %170 = arith.negf %169 : vector<8x256xf32>
    %171 = math.exp %170 : vector<8x256xf32>
    %cst_47 = arith.constant 1.000000e+00 : f32
    %172 = vector.broadcast %cst_47 : f32 to vector<8x256xf32>
    %173 = arith.addf %172, %171 : vector<8x256xf32>
    %174 = arith.divf %172, %173 : vector<8x256xf32>
    %175 = vector.extract_strided_slice %174 {offsets = [0, 0], sizes = [8, 128], strides = [1, 1]} : vector<8x256xf32> to vector<8x128xf32>
    %176 = vector.extract_strided_slice %174 {offsets = [0, 128], sizes = [8, 128], strides = [1, 1]} : vector<8x256xf32> to vector<8x128xf32>
    %177 = vector.extract_strided_slice %164 {offsets = [0, 256], sizes = [8, 128], strides = [1, 1]} : vector<8x384xf32> to vector<8x128xf32>
    %178 = vector.extract_strided_slice %166 {offsets = [0, 256], sizes = [8, 128], strides = [1, 1]} : vector<8x384xf32> to vector<8x128xf32>
    %179 = arith.addf %178, %14 : vector<8x128xf32>
    %180 = arith.mulf %175, %179 : vector<8x128xf32>
    %181 = arith.addf %177, %180 : vector<8x128xf32>
    %182 = math.tanh %181 : vector<8x128xf32>
    %cst_48 = arith.constant 1.000000e+00 : f32
    %183 = vector.broadcast %cst_48 : f32 to vector<8x128xf32>
    %184 = arith.subf %183, %176 : vector<8x128xf32>
    %185 = arith.mulf %184, %182 : vector<8x128xf32>
    %186 = arith.mulf %176, %158 : vector<8x128xf32>
    %187 = arith.addf %185, %186 : vector<8x128xf32>
    %188 = arith.index_cast %162 : i32 to index
    %c0_49 = arith.constant 0 : index
    %189 = vector.load %arg11[%188, %c0_49] : memref<64x128xf32, #tpu.memory_space<vmem>>, vector<8x128xf32>
    tpu.vector_store %arg11[%188, %c0_49], %187 {strides = array<i32>} : memref<64x128xf32, #tpu.memory_space<vmem>>, vector<8x128xf32>,
    %c6_i32 = arith.constant 6 : i32
    %c8_i32_50 = arith.constant 8 : i32
    %190 = arith.muli %c6_i32, %c8_i32_50 : i32
    %191 = tpu.assume_multiple %190, 8 : i32
    %192 = arith.index_cast %191 : i32 to index
    %c0_51 = arith.constant 0 : index
    %193 = vector.load %arg10[%192, %c0_51] : memref<64x384xf32, #tpu.memory_space<vmem>>, vector<8x384xf32>
    %194 = arith.truncf %187 : vector<8x128xf32> to vector<8x128xbf16>
    %cst_52 = arith.constant dense<0.000000e+00> : vector<8x384xf32>
    %195 = tpu.matmul %194, %11, %cst_52 {dimension_numbers = #tpu.dot_dimension_numbers<[1], [0], [0], [1], [0, 0, 1, 1], [], []>} : vector<8x128xbf16>, vector<128x384xbf16>, vector<8x384xf32> -> vector<8x384xf32>
    %196 = vector.extract_strided_slice %193 {offsets = [0, 0], sizes = [8, 256], strides = [1, 1]} : vector<8x384xf32> to vector<8x256xf32>
    %197 = vector.extract_strided_slice %195 {offsets = [0, 0], sizes = [8, 256], strides = [1, 1]} : vector<8x384xf32> to vector<8x256xf32>
    %198 = arith.addf %196, %197 : vector<8x256xf32>
    %199 = arith.negf %198 : vector<8x256xf32>
    %200 = math.exp %199 : vector<8x256xf32>
    %cst_53 = arith.constant 1.000000e+00 : f32
    %201 = vector.broadcast %cst_53 : f32 to vector<8x256xf32>
    %202 = arith.addf %201, %200 : vector<8x256xf32>
    %203 = arith.divf %201, %202 : vector<8x256xf32>
    %204 = vector.extract_strided_slice %203 {offsets = [0, 0], sizes = [8, 128], strides = [1, 1]} : vector<8x256xf32> to vector<8x128xf32>
    %205 = vector.extract_strided_slice %203 {offsets = [0, 128], sizes = [8, 128], strides = [1, 1]} : vector<8x256xf32> to vector<8x128xf32>
    %206 = vector.extract_strided_slice %193 {offsets = [0, 256], sizes = [8, 128], strides = [1, 1]} : vector<8x384xf32> to vector<8x128xf32>
    %207 = vector.extract_strided_slice %195 {offsets = [0, 256], sizes = [8, 128], strides = [1, 1]} : vector<8x384xf32> to vector<8x128xf32>
    %208 = arith.addf %207, %14 : vector<8x128xf32>
    %209 = arith.mulf %204, %208 : vector<8x128xf32>
    %210 = arith.addf %206, %209 : vector<8x128xf32>
    %211 = math.tanh %210 : vector<8x128xf32>
    %cst_54 = arith.constant 1.000000e+00 : f32
    %212 = vector.broadcast %cst_54 : f32 to vector<8x128xf32>
    %213 = arith.subf %212, %205 : vector<8x128xf32>
    %214 = arith.mulf %213, %211 : vector<8x128xf32>
    %215 = arith.mulf %205, %187 : vector<8x128xf32>
    %216 = arith.addf %214, %215 : vector<8x128xf32>
    %217 = arith.index_cast %191 : i32 to index
    %c0_55 = arith.constant 0 : index
    %218 = vector.load %arg11[%217, %c0_55] : memref<64x128xf32, #tpu.memory_space<vmem>>, vector<8x128xf32>
    tpu.vector_store %arg11[%217, %c0_55], %216 {strides = array<i32>} : memref<64x128xf32, #tpu.memory_space<vmem>>, vector<8x128xf32>,
    %c7_i32 = arith.constant 7 : i32
    %c8_i32_56 = arith.constant 8 : i32
    %219 = arith.muli %c7_i32, %c8_i32_56 : i32
    %220 = tpu.assume_multiple %219, 8 : i32
    %221 = arith.index_cast %220 : i32 to index
    %c0_57 = arith.constant 0 : index
    %222 = vector.load %arg10[%221, %c0_57] : memref<64x384xf32, #tpu.memory_space<vmem>>, vector<8x384xf32>
    %223 = arith.truncf %216 : vector<8x128xf32> to vector<8x128xbf16>
    %cst_58 = arith.constant dense<0.000000e+00> : vector<8x384xf32>
    %224 = tpu.matmul %223, %11, %cst_58 {dimension_numbers = #tpu.dot_dimension_numbers<[1], [0], [0], [1], [0, 0, 1, 1], [], []>} : vector<8x128xbf16>, vector<128x384xbf16>, vector<8x384xf32> -> vector<8x384xf32>
    %225 = vector.extract_strided_slice %222 {offsets = [0, 0], sizes = [8, 256], strides = [1, 1]} : vector<8x384xf32> to vector<8x256xf32>
    %226 = vector.extract_strided_slice %224 {offsets = [0, 0], sizes = [8, 256], strides = [1, 1]} : vector<8x384xf32> to vector<8x256xf32>
    %227 = arith.addf %225, %226 : vector<8x256xf32>
    %228 = arith.negf %227 : vector<8x256xf32>
    %229 = math.exp %228 : vector<8x256xf32>
    %cst_59 = arith.constant 1.000000e+00 : f32
    %230 = vector.broadcast %cst_59 : f32 to vector<8x256xf32>
    %231 = arith.addf %230, %229 : vector<8x256xf32>
    %232 = arith.divf %230, %231 : vector<8x256xf32>
    %233 = vector.extract_strided_slice %232 {offsets = [0, 0], sizes = [8, 128], strides = [1, 1]} : vector<8x256xf32> to vector<8x128xf32>
    %234 = vector.extract_strided_slice %232 {offsets = [0, 128], sizes = [8, 128], strides = [1, 1]} : vector<8x256xf32> to vector<8x128xf32>
    %235 = vector.extract_strided_slice %222 {offsets = [0, 256], sizes = [8, 128], strides = [1, 1]} : vector<8x384xf32> to vector<8x128xf32>
    %236 = vector.extract_strided_slice %224 {offsets = [0, 256], sizes = [8, 128], strides = [1, 1]} : vector<8x384xf32> to vector<8x128xf32>
    %237 = arith.addf %236, %14 : vector<8x128xf32>
    %238 = arith.mulf %233, %237 : vector<8x128xf32>
    %239 = arith.addf %235, %238 : vector<8x128xf32>
    %240 = math.tanh %239 : vector<8x128xf32>
    %cst_60 = arith.constant 1.000000e+00 : f32
    %241 = vector.broadcast %cst_60 : f32 to vector<8x128xf32>
    %242 = arith.subf %241, %234 : vector<8x128xf32>
    %243 = arith.mulf %242, %240 : vector<8x128xf32>
    %244 = arith.mulf %234, %216 : vector<8x128xf32>
    %245 = arith.addf %243, %244 : vector<8x128xf32>
    %246 = arith.index_cast %220 : i32 to index
    %c0_61 = arith.constant 0 : index
    %247 = vector.load %arg11[%246, %c0_61] : memref<64x128xf32, #tpu.memory_space<vmem>>, vector<8x128xf32>
    tpu.vector_store %arg11[%246, %c0_61], %245 {strides = array<i32>} : memref<64x128xf32, #tpu.memory_space<vmem>>, vector<8x128xf32>,
    %c8_i32_62 = arith.constant 8 : i32
    %c0_63 = arith.constant 0 : index
    %c0_64 = arith.constant 0 : index
    %248 = vector.load %arg9[%c0_63, %c0_64] : memref<8x128xf32, #tpu.memory_space<vmem>>, vector<8x128xf32>
    tpu.vector_store %arg9[%c0_63, %c0_64], %245 {strides = array<i32>} : memref<8x128xf32, #tpu.memory_space<vmem>>, vector<8x128xf32>,
    %c0_65 = arith.constant 0 : index
    %c0_66 = arith.constant 0 : index
    %249 = vector.load %arg11[%c0_65, %c0_66] : memref<64x128xf32, #tpu.memory_space<vmem>>, vector<64x128xf32>
    %250 = arith.truncf %249 : vector<64x128xf32> to vector<64x128xbf16>
    %c0_67 = arith.constant 0 : index
    %c0_68 = arith.constant 0 : index
    %251 = vector.load %arg6[%c0_67, %c0_68] : memref<128x16xbf16, #tpu.memory_space<vmem>>, vector<128x16xbf16>
    %cst_69 = arith.constant dense<0.000000e+00> : vector<64x16xf32>
    %252 = tpu.matmul %250, %251, %cst_69 {dimension_numbers = #tpu.dot_dimension_numbers<[1], [0], [0], [1], [0, 0, 1, 1], [], []>} : vector<64x128xbf16>, vector<128x16xbf16>, vector<64x16xf32> -> vector<64x16xf32>
    %c0_70 = arith.constant 0 : index
    %c0_71 = arith.constant 0 : index
    %253 = vector.load %arg7[%c0_70, %c0_71] : memref<1x16xf32, #tpu.memory_space<vmem>>, vector<1x16xf32>
    %254 = vector.broadcast %253 : vector<1x16xf32> to vector<64x16xf32>
    %255 = arith.addf %252, %254 : vector<64x16xf32>
    %c0_72 = arith.constant 0 : index
    %c0_73 = arith.constant 0 : index
    %256 = vector.load %arg8[%c0_72, %c0_73] : memref<64x16xf32, #tpu.memory_space<vmem>>, vector<64x16xf32>
    tpu.vector_store %arg8[%c0_72, %c0_73], %255 {strides = array<i32>} : memref<64x16xf32, #tpu.memory_space<vmem>>, vector<64x16xf32>,
    return
  }
  func.func @transform_0(%arg0: i32) -> (i32, i32) {
    %c0_i32 = arith.constant 0 : i32
    %c0_i32_0 = arith.constant 0 : i32
    return %arg0, %c0_i32 : i32, i32
  }
  func.func @transform_1(%arg0: i32) -> (i32, i32) {
    %c0_i32 = arith.constant 0 : i32
    %c0_i32_0 = arith.constant 0 : i32
    %c0_i32_1 = arith.constant 0 : i32
    return %c0_i32, %c0_i32_0 : i32, i32
  }
  func.func @transform_2(%arg0: i32) -> (i32, i32) {
    %c0_i32 = arith.constant 0 : i32
    %c0_i32_0 = arith.constant 0 : i32
    %c0_i32_1 = arith.constant 0 : i32
    return %c0_i32, %c0_i32_0 : i32, i32
  }
  func.func @transform_3(%arg0: i32) -> (i32, i32) {
    %c0_i32 = arith.constant 0 : i32
    %c0_i32_0 = arith.constant 0 : i32
    %c0_i32_1 = arith.constant 0 : i32
    return %c0_i32, %c0_i32_0 : i32, i32
  }
  func.func @transform_4(%arg0: i32) -> (i32, i32) {
    %c0_i32 = arith.constant 0 : i32
    %c0_i32_0 = arith.constant 0 : i32
    %c0_i32_1 = arith.constant 0 : i32
    return %c0_i32, %c0_i32_0 : i32, i32
  }
  func.func @transform_5(%arg0: i32) -> (i32, i32) {
    %c0_i32 = arith.constant 0 : i32
    %c0_i32_0 = arith.constant 0 : i32
    %c0_i32_1 = arith.constant 0 : i32
    return %c0_i32, %c0_i32_0 : i32, i32
  }
  func.func @transform_6(%arg0: i32) -> (i32, i32) {
    %c0_i32 = arith.constant 0 : i32
    %c0_i32_0 = arith.constant 0 : i32
    %c0_i32_1 = arith.constant 0 : i32
    return %c0_i32, %c0_i32_0 : i32, i32
  }
  func.func @transform_7(%arg0: i32) -> (i32, i32) {
    %c0_i32 = arith.constant 0 : i32
    %c0_i32_0 = arith.constant 0 : i32
    return %arg0, %c0_i32 : i32, i32
  }
}

</mosaic_0001>

<llo_original>
// kernel: birnn_forward.1
$region0: #{birnn_forward.1}
  #allocation0 [shape = 'u32[]', space=smem, size = 0x4, offset = 0x4, fixed_abs, tag = 'smem constant byte address 0x4 - core index']
  #allocation1 [shape = 'u32[144,128]{1,0:T(1,128)}', space=vmem, size = 0x12000, scoped, tag = 'internal scratch']
  #allocation2 [shape = 'f32[8,128]{1,0:T(8,128)}', space=vmem, size = 0x1000, scoped, tag = 'scratch operand']
  #allocation3 [shape = 'f32[64,384]{1,0:T(8,128)}', space=vmem, size = 0x18000, scoped, tag = 'scratch operand']
  #allocation4 [shape = 'f32[64,128]{1,0:T(8,128)}', space=vmem, size = 0x8000, scoped, tag = 'scratch operand']
  %s0 = inlined_call_operand.vmem [shape: f32[64,4], index: 0, kind: input, shape index: {}]
  %s1 = inlined_call_operand.vmem [shape: bf16[4,384], index: 1, kind: input, shape index: {}]
  %s2 = inlined_call_operand.hbm [shape: f32[1,384], index: 2, kind: input, shape index: {}]
  %s3 = inlined_call_operand.vmem [shape: bf16[128,384], index: 3, kind: input, shape index: {}]
  %s4 = inlined_call_operand.hbm [shape: f32[1,128], index: 4, kind: input, shape index: {}]
  %s5 = inlined_call_operand.vmem [shape: bf16[128,16], index: 5, kind: input, shape index: {}]
  %s6 = inlined_call_operand.hbm [shape: f32[1,16], index: 6, kind: input, shape index: {}]
  %s7 = inlined_call_operand.vmem [shape: f32[64,16], index: 7, kind: output, shape index: {}]
  %s8 = sld [smem:[#allocation0]]
  $region54: #{birnn_forward.1} parent=0
    _
  %s10 = ssub.s32 1, %s8
  %s11 = scalar_select 0, %s10, %s8
  $region1: #{birnn_forward.1} parent=0
    #allocation5 [shape = 'u8[1536]{0}', space=vmem, size = 0x800, scoped, tag = 'input window, operand 2, single buffered']
    #allocation6 [shape = 's32[1]{0}', space=sflag, size = 0x4, scoped, tag = 'scoped memory for birnn_forward.1']
    #allocation7 [shape = 'u8[512]{0}', space=vmem, size = 0x400, scoped, tag = 'input window, operand 4, single buffered']
    #allocation8 [shape = 's32[1]{0}', space=sflag, size = 0x4, scoped, tag = 'scoped memory for birnn_forward.1']
    #allocation9 [shape = 'u8[512]{0}', space=vmem, size = 0x400, scoped, tag = 'input window, operand 6, single buffered']
    %12 = vsyncpa [#allocation6], 0
    %13 = vsyncpa [#allocation8], 0
    // Predicated region
    $region2: #{birnn_forward.1} parent=1 // pred_check
      _
    $region3: #{birnn_forward.1} parent=1 // pred_check_branch
      %15 = sbr.rel (0) target = $region5
    $region4: #{birnn_forward.1} parent=1 // pred_region
      _
    $region5: #{birnn_forward.1} parent=1 // pred_fallthru
      _
    // Predicated region
    $region6: #{birnn_forward.1} parent=1 // pred_check
      _
    $region7: #{birnn_forward.1} parent=1 // pred_check_branch
      %17 = sbr.rel (0) target = $region9
    $region8: #{birnn_forward.1} parent=1 // pred_region
      _
    $region9: #{birnn_forward.1} parent=1 // pred_fallthru
      _
    // Predicated region
    $region10: #{birnn_forward.1} parent=1 // pred_check
      _
    $region11: #{birnn_forward.1} parent=1 // pred_check_branch
      %19 = sbr.rel (0) target = $region13
    $region12: #{birnn_forward.1} parent=1 // pred_region
      %s21 = ssub.s32 48, 48
      %22 = vsyncadd [#allocation6], %s21
      %s24 = sshll.u32 [#allocation5], 4
      %s25 = int_to_ptr.vmem [resolvable:$true] %s24
      %27 = dma.hbm_to_vmem [thread:$0]  %s2, 48, %s25, [#allocation6]
    $region13: #{birnn_forward.1} parent=1 // pred_fallthru
      _
    // Predicated region
    $region14: #{birnn_forward.1} parent=1 // pred_check
      _
    $region15: #{birnn_forward.1} parent=1 // pred_check_branch
      %29 = sbr.rel (0) target = $region17
    $region16: #{birnn_forward.1} parent=1 // pred_region
      _
    $region17: #{birnn_forward.1} parent=1 // pred_fallthru
      _
    // Predicated region
    $region18: #{birnn_forward.1} parent=1 // pred_check
      _
    $region19: #{birnn_forward.1} parent=1 // pred_check_branch
      %31 = sbr.rel (0) target = $region21
    $region20: #{birnn_forward.1} parent=1 // pred_region
      %s33 = ssub.s32 16, 16
      %34 = vsyncadd [#allocation8], %s33
      %s36 = sshll.u32 [#allocation7], 4
      %s37 = int_to_ptr.vmem [resolvable:$true] %s36
      %39 = dma.hbm_to_vmem [thread:$0]  %s4, 16, %s37, [#allocation8]
    $region21: #{birnn_forward.1} parent=1 // pred_fallthru
      _
    // Predicated region
    $region22: #{birnn_forward.1} parent=1 // pred_check
      _
    $region23: #{birnn_forward.1} parent=1 // pred_check_branch
      %41 = sbr.rel (0) target = $region25
    $region24: #{birnn_forward.1} parent=1 // pred_region
      _
    $region25: #{birnn_forward.1} parent=1 // pred_fallthru
      _
    // Predicated region
    $region26: #{birnn_forward.1} parent=1 // pred_check
      _
    $region27: #{birnn_forward.1} parent=1 // pred_check_branch
      %43 = sbr.rel (0) target = $region29
    $region28: #{birnn_forward.1} parent=1 // pred_region
      %s45 = ssub.s32 16, 16
      %46 = vsyncadd [#allocation8], %s45
      %s48 = sshll.u32 [#allocation9], 4
      %s49 = int_to_ptr.vmem [resolvable:$true] %s48
      %51 = dma.hbm_to_vmem [thread:$0]  %s6, 16, %s49, [#allocation8]
    $region29: #{birnn_forward.1} parent=1 // pred_fallthru
      _
    // Predicated region
    $region30: #{birnn_forward.1} parent=1 // pred_check
      _
    $region31: #{birnn_forward.1} parent=1 // pred_check_branch
      %53 = sbr.rel (0) target = $region33
    $region32: #{birnn_forward.1} parent=1 // pred_region
      %54 = dma.done [#allocation6], 48
    $region33: #{birnn_forward.1} parent=1 // pred_fallthru
      _
    // Predicated region
    $region34: #{birnn_forward.1} parent=1 // pred_check
      _
    $region35: #{birnn_forward.1} parent=1 // pred_check_branch
      %56 = sbr.rel (0) target = $region37
    $region36: #{birnn_forward.1} parent=1 // pred_region
      %57 = dma.done [#allocation8], 16
    $region37: #{birnn_forward.1} parent=1 // pred_fallthru
      _
    // Predicated region
    $region38: #{birnn_forward.1} parent=1 // pred_check
      _
    $region39: #{birnn_forward.1} parent=1 // pred_check_branch
      %59 = sbr.rel (0) target = $region41
    $region40: #{birnn_forward.1} parent=1 // pred_region
      %60 = dma.done [#allocation8], 16
    $region41: #{birnn_forward.1} parent=1 // pred_fallthru
      _
    %p62 = scmp.eq.s32.totalorder 0, 0
    // Predicated region
    $region42: #{birnn_forward.1} parent=1 // pred_check
      %p63 = pneg %p62
    $region43: #{birnn_forward.1} parent=1 // pred_check_branch
      %65 = sbr.rel (%p63) target = $region45
    $region44: #{birnn_forward.1} parent=1 // pred_region
      %66 = vst [vmem:[#allocation2] sm:$0xff] 0.0
    $region45: #{birnn_forward.1} parent=1 // pred_fallthru
      _
    %v67 = vld [vmem:[%s0] sm:$0xff]
    %v68 = vld [vmem:[%s0 + $0x8] sm:$0xff]
    %v69 = vld [vmem:[%s0 + $0x10] sm:$0xff]
    %v70 = vld [vmem:[%s0 + $0x18] sm:$0xff]
    %v71 = vld [vmem:[%s0 + $0x20] sm:$0xff]
    %v72 = vld [vmem:[%s0 + $0x28] sm:$0xff]
    %v73 = vld [vmem:[%s0 + $0x30] sm:$0xff]
    %v74 = vld [vmem:[%s0 + $0x38] sm:$0xff]
    %v75 = vpack.c.bf16 %v68, %v67
    %v76 = vpack.c.bf16 %v70, %v69
    %v77 = vpack.c.bf16 %v72, %v71
    %v78 = vpack.c.bf16 %v74, %v73
    %v79 = vld [vmem:[%s1] sm:$0x3f]
    %v80 = vld [vmem:[#allocation5] sm:$0x7]
    %v82 = vlaneseq
    %v83 = vshrl.u32 %v82, 7
    %v84 = vsub.s32 0, %v83
    %v85 = vrot.slane %v80, %v84
    %v86 = vlaneseq
    %v87 = vshrl.u32 %v86, 7
    %v88 = vsub.s32 1, %v87
    %v89 = vrot.slane %v80, %v88
    %v90 = vlaneseq
    %v91 = vshrl.u32 %v90, 7
    %v92 = vsub.s32 2, %v91
    %v93 = vrot.slane %v80, %v92
    %v98 = vcombine.high %v79, %v79
    %v100 = vunpack.c.l.s4 1983009808
    %v101 = vunpack.c.0.s8 %v100
    %v102 = vlaneseq
    %v103 = vshrl.u32 %v102, 7
    %v104 = vsub.s32 %v101, %v103
    %v105 = vrot.slane %v79, %v104
    %v107 = vunpack.c.l.s4 1983009808
    %v108 = vunpack.c.0.s8 %v107
    %v109 = vlaneseq
    %v110 = vshrl.u32 %v109, 7
    %v111 = vsub.s32 %v108, %v110
    %v112 = vrot.slane %v98, %v111
    %v113 = vcombine.high %v105, %v105
    %vm114 = vcmask 31744
    %v116 = vsel %vm114, %v75, 0
    %v119 = vsel %vm114, %v76, 0
    %v122 = vsel %vm114, %v77, 0
    %v125 = vsel %vm114, %v78, 0
    %vm127 = vcmask 1041408
    %v129 = vsel %vm127, %v105, 0
    %v132 = vsel %vm127, %v113, 0
    %v135 = vsel %vm127, %v112, 0
    %137 = vmatprep.subr.bf16.mxu0 %v132
    %138 = vmatpush1.bf16.msra.mxu0 %v129
    %139 = vmatprep.subr.bf16.mxu0 0
    %140 = vmatpush1.bf16.msra.mxu0 0
    %141 = vmatprep.subr.bf16.mxu0 0
    %142 = vmatpush1.bf16.msra.mxu0 0
    %143 = vmatprep.subr.bf16.mxu0 0
    %144 = vmatpush1.bf16.msra.mxu0 0
    %145 = vmatprep.subr.bf16.mxu0 0
    %146 = vmatpush1.bf16.msra.mxu0 0
    %147 = vmatprep.subr.bf16.mxu0 0
    %148 = vmatpush1.bf16.msra.mxu0 0
    %149 = vmatprep.subr.bf16.mxu0 0
    %150 = vmatpush1.bf16.msra.mxu0 0
    %151 = vmatprep.subr.bf16.mxu0 0
    %152 = vmatpush1.bf16.msra.mxu0 0
    %153 = vmatprep.subr.bf16.mxu0 0
    %154 = vmatpush1.bf16.msra.mxu0 0
    %155 = vmatprep.subr.bf16.mxu0 0
    %156 = vmatpush1.bf16.msra.mxu0 0
    %157 = vmatprep.subr.bf16.mxu0 0
    %158 = vmatpush1.bf16.msra.mxu0 0
    %159 = vmatprep.subr.bf16.mxu0 0
    %160 = vmatpush1.bf16.msra.mxu0 0
    %161 = vmatprep.subr.bf16.mxu0 0
    %162 = vmatpush1.bf16.msra.mxu0 0
    %163 = vmatprep.subr.bf16.mxu0 0
    %164 = vmatpush1.bf16.msra.mxu0 0
    %165 = vmatprep.subr.bf16.mxu0 0
    %166 = vmatpush1.bf16.msra.mxu0 0
    %167 = vmatprep.subr.bf16.mxu0 0
    %168 = vmatpush1.bf16.msra.mxu0 0
    %169 = vmatprep.mubr.bf16.mxu0 0
    %170 = vmatmul.mubr.bf16.gmra.mrb[0].mxu0 %v116
    %v171 = vpop.f32.mrb[0].mxu0
    %v172 = vadd.f32 %v85, %v171
    %v173 = vpop.f32.mrb[0].mxu0
    %v174 = vadd.f32 %v89, %v173
    %v175 = vpop.f32.mrb[0].mxu0
    %v176 = vadd.f32 %v85, %v175
    %v177 = vpop.f32.mrb[0].mxu0
    %v178 = vadd.f32 %v89, %v177
    %179 = vmatprep.mubr.bf16.mxu0 0
    %180 = vmatmul.mubr.bf16.gmra.mrb[0].mxu0 %v119
    %v181 = vpop.f32.mrb[0].mxu0
    %v182 = vadd.f32 %v85, %v181
    %v183 = vpop.f32.mrb[0].mxu0
    %v184 = vadd.f32 %v89, %v183
    %v185 = vpop.f32.mrb[0].mxu0
    %v186 = vadd.f32 %v85, %v185
    %v187 = vpop.f32.mrb[0].mxu0
    %v188 = vadd.f32 %v89, %v187
    %189 = vmatprep.mubr.bf16.mxu0 0
    %190 = vmatmul.mubr.bf16.gmra.mrb[0].mxu0 %v122
    %v191 = vpop.f32.mrb[0].mxu0
    %v192 = vadd.f32 %v85, %v191
    %v193 = vpop.f32.mrb[0].mxu0
    %v194 = vadd.f32 %v89, %v193
    %v195 = vpop.f32.mrb[0].mxu0
    %v196 = vadd.f32 %v85, %v195
    %v197 = vpop.f32.mrb[0].mxu0
    %v198 = vadd.f32 %v89, %v197
    %199 = vmatprep.mubr.bf16.mxu0 0
    %200 = vmatmul.mubr.bf16.gmra.mrb[0].mxu0 %v125
    %v201 = vpop.f32.mrb[0].mxu0
    %v202 = vadd.f32 %v85, %v201
    %v203 = vpop.f32.mrb[0].mxu0
    %v204 = vadd.f32 %v89, %v203
    %v205 = vpop.f32.mrb[0].mxu0
    %v206 = vadd.f32 %v85, %v205
    %v207 = vpop.f32.mrb[0].mxu0
    %v208 = vadd.f32 %v89, %v207
    %209 = vdwg.mxu0
    %210 = vmatprep.subr.bf16.mxu0 0
    %211 = vmatpush1.bf16.msra.mxu0 %v135
    %212 = vmatprep.subr.bf16.mxu0 0
    %213 = vmatpush1.bf16.msra.mxu0 0
    %214 = vmatprep.subr.bf16.mxu0 0
    %215 = vmatpush1.bf16.msra.mxu0 0
    %216 = vmatprep.subr.bf16.mxu0 0
    %217 = vmatpush1.bf16.msra.mxu0 0
    %218 = vmatprep.subr.bf16.mxu0 0
    %219 = vmatpush1.bf16.msra.mxu0 0
    %220 = vmatprep.subr.bf16.mxu0 0
    %221 = vmatpush1.bf16.msra.mxu0 0
    %222 = vmatprep.subr.bf16.mxu0 0
    %223 = vmatpush1.bf16.msra.mxu0 0
    %224 = vmatprep.subr.bf16.mxu0 0
    %225 = vmatpush1.bf16.msra.mxu0 0
    %226 = vmatprep.subr.bf16.mxu0 0
    %227 = vmatpush1.bf16.msra.mxu0 0
    %228 = vmatprep.subr.bf16.mxu0 0
    %229 = vmatpush1.bf16.msra.mxu0 0
    %230 = vmatprep.subr.bf16.mxu0 0
    %231 = vmatpush1.bf16.msra.mxu0 0
    %232 = vmatprep.subr.bf16.mxu0 0
    %233 = vmatpush1.bf16.msra.mxu0 0
    %234 = vmatprep.subr.bf16.mxu0 0
    %235 = vmatpush1.bf16.msra.mxu0 0
    %236 = vmatprep.subr.bf16.mxu0 0
    %237 = vmatpush1.bf16.msra.mxu0 0
    %238 = vmatprep.subr.bf16.mxu0 0
    %239 = vmatpush1.bf16.msra.mxu0 0
    %240 = vmatprep.subr.bf16.mxu0 0
    %241 = vmatpush1.bf16.msra.mxu0 0
    %242 = vmatprep.mubr.bf16.mxu0 0
    %243 = vmatmul.mubr.bf16.gmra.mrb[0].mxu0 %v116
    %v244 = vpop.f32.mrb[0].mxu0
    %v245 = vadd.f32 %v93, %v244
    %v246 = vpop.f32.mrb[0].mxu0
    %v247 = vpop.f32.mrb[0].mxu0
    %v248 = vadd.f32 %v93, %v247
    %v249 = vpop.f32.mrb[0].mxu0
    %250 = vmatprep.mubr.bf16.mxu0 0
    %251 = vmatmul.mubr.bf16.gmra.mrb[0].mxu0 %v119
    %v252 = vpop.f32.mrb[0].mxu0
    %v253 = vadd.f32 %v93, %v252
    %v254 = vpop.f32.mrb[0].mxu0
    %v255 = vpop.f32.mrb[0].mxu0
    %v256 = vadd.f32 %v93, %v255
    %v257 = vpop.f32.mrb[0].mxu0
    %258 = vmatprep.mubr.bf16.mxu0 0
    %259 = vmatmul.mubr.bf16.gmra.mrb[0].mxu0 %v122
    %v260 = vpop.f32.mrb[0].mxu0
    %v261 = vadd.f32 %v93, %v260
    %v262 = vpop.f32.mrb[0].mxu0
    %v263 = vpop.f32.mrb[0].mxu0
    %v264 = vadd.f32 %v93, %v263
    %v265 = vpop.f32.mrb[0].mxu0
    %266 = vmatprep.mubr.bf16.mxu0 0
    %267 = vmatmul.mubr.bf16.gmra.mrb[0].mxu0 %v125
    %v268 = vpop.f32.mrb[0].mxu0
    %v269 = vadd.f32 %v93, %v268
    %v270 = vpop.f32.mrb[0].mxu0
    %v271 = vpop.f32.mrb[0].mxu0
    %v272 = vadd.f32 %v93, %v271
    %v273 = vpop.f32.mrb[0].mxu0
    %274 = vdwg.mxu0
    %275 = vst [vmem:[#allocation3] sm:$0xff] %v172
    %276 = vst [vmem:[#allocation3 + $0x8] sm:$0xff] %v174
    %277 = vst [vmem:[#allocation3 + $0x10] sm:$0xff] %v245
    %278 = vst [vmem:[#allocation3 + $0x18] sm:$0xff] %v176
    %279 = vst [vmem:[#allocation3 + $0x20] sm:$0xff] %v178
    %280 = vst [vmem:[#allocation3 + $0x28] sm:$0xff] %v248
    %281 = vst [vmem:[#allocation3 + $0x30] sm:$0xff] %v182
    %282 = vst [vmem:[#allocation3 + $0x38] sm:$0xff] %v184
    %283 = vst [vmem:[#allocation3 + $0x40] sm:$0xff] %v253
    %284 = vst [vmem:[#allocation3 + $0x48] sm:$0xff] %v186
    %285 = vst [vmem:[#allocation3 + $0x50] sm:$0xff] %v188
    %286 = vst [vmem:[#allocation3 + $0x58] sm:$0xff] %v256
    %287 = vst [vmem:[#allocation3 + $0x60] sm:$0xff] %v192
    %288 = vst [vmem:[#allocation3 + $0x68] sm:$0xff] %v194
    %289 = vst [vmem:[#allocation3 + $0x70] sm:$0xff] %v261
    %290 = vst [vmem:[#allocation3 + $0x78] sm:$0xff] %v196
    %291 = vst [vmem:[#allocation3 + $0x80] sm:$0xff] %v198
    %292 = vst [vmem:[#allocation3 + $0x88] sm:$0xff] %v264
    %293 = vst [vmem:[#allocation3 + $0x90] sm:$0xff] %v202
    %294 = vst [vmem:[#allocation3 + $0x98] sm:$0xff] %v204
    %295 = vst [vmem:[#allocation3 + $0xa0] sm:$0xff] %v269
    %296 = vst [vmem:[#allocation3 + $0xa8] sm:$0xff] %v206
    %297 = vst [vmem:[#allocation3 + $0xb0] sm:$0xff] %v208
    %298 = vst [vmem:[#allocation3 + $0xb8] sm:$0xff] %v272
    %v299 = vld [vmem:[%s3] sm:$0xff]
    %v300 = vld [vmem:[%s3 + $0x8] sm:$0xf]
    %v301 = vld [vmem:[%s3 + $0xc] sm:$0xff]
    %v302 = vld [vmem:[%s3 + $0x14] sm:$0xf]
    %v303 = vld [vmem:[%s3 + $0x18] sm:$0xff]
    %v304 = vld [vmem:[%s3 + $0x20] sm:$0xf]
    %v305 = vld [vmem:[%s3 + $0x24] sm:$0xff]
    %v306 = vld [vmem:[%s3 + $0x2c] sm:$0xf]
    %v307 = vld [vmem:[%s3 + $0x30] sm:$0xff]
    %v308 = vld [vmem:[%s3 + $0x38] sm:$0xf]
    %v309 = vld [vmem:[%s3 + $0x3c] sm:$0xff]
    %v310 = vld [vmem:[%s3 + $0x44] sm:$0xf]
    %v311 = vld [vmem:[%s3 + $0x48] sm:$0xff]
    %v312 = vld [vmem:[%s3 + $0x50] sm:$0xf]
    %v313 = vld [vmem:[%s3 + $0x54] sm:$0xff]
    %v314 = vld [vmem:[%s3 + $0x5c] sm:$0xf]
    %v315 = vld [vmem:[%s3 + $0x60] sm:$0xff]
    %v316 = vld [vmem:[%s3 + $0x68] sm:$0xf]
    %v317 = vld [vmem:[%s3 + $0x6c] sm:$0xff]
    %v318 = vld [vmem:[%s3 + $0x74] sm:$0xf]
    %v319 = vld [vmem:[%s3 + $0x78] sm:$0xff]
    %v320 = vld [vmem:[%s3 + $0x80] sm:$0xf]
    %v321 = vld [vmem:[%s3 + $0x84] sm:$0xff]
    %v322 = vld [vmem:[%s3 + $0x8c] sm:$0xf]
    %v323 = vld [vmem:[%s3 + $0x90] sm:$0xff]
    %v324 = vld [vmem:[%s3 + $0x98] sm:$0xf]
    %v325 = vld [vmem:[%s3 + $0x9c] sm:$0xff]
    %v326 = vld [vmem:[%s3 + $0xa4] sm:$0xf]
    %v327 = vld [vmem:[%s3 + $0xa8] sm:$0xff]
    %v328 = vld [vmem:[%s3 + $0xb0] sm:$0xf]
    %v329 = vld [vmem:[%s3 + $0xb4] sm:$0xff]
    %v330 = vld [vmem:[%s3 + $0xbc] sm:$0xf]
    %v331 = vld [vmem:[#allocation7] sm:$0x1]
    %v333 = vlaneseq
    %v334 = vshrl.u32 %v333, 7
    %v335 = vsub.s32 0, %v334
    %v336 = vrot.slane %v331, %v335
    %v338 = vld [vmem:[#allocation2] sm:$0xff]
    %s339 = smul.u32 0, 3
    %s340 = smul.addr %s339, 8
    %s341 = scalar_lea.vmem [#allocation3], %s340
    %v342 = vld [vmem:[%s341] sm:$0xff]
    %v343 = vld [vmem:[%s341 + $0x8] sm:$0xff]
    %v344 = vld [vmem:[%s341 + $0x10] sm:$0xff]
    %v345 = vpack.c.bf16 %v338, %v338
    %v378 = vunpack.c.l.b16 %v299
    %v379 = vunpack.c.h.b16 %v299
    %v380 = vunpack.c.l.b16 %v300
    %v381 = vunpack.c.l.b16 %v301
    %v382 = vunpack.c.h.b16 %v301
    %v383 = vunpack.c.l.b16 %v302
    %v384 = vunpack.c.l.b16 %v303
    %v385 = vunpack.c.h.b16 %v303
    %v386 = vunpack.c.l.b16 %v304
    %v387 = vunpack.c.l.b16 %v305
    %v388 = vunpack.c.h.b16 %v305
    %v389 = vunpack.c.l.b16 %v306
    %v390 = vunpack.c.l.b16 %v307
    %v391 = vunpack.c.h.b16 %v307
    %v392 = vunpack.c.l.b16 %v308
    %v393 = vunpack.c.l.b16 %v309
    %v394 = vunpack.c.h.b16 %v309
    %v395 = vunpack.c.l.b16 %v310
    %v396 = vunpack.c.l.b16 %v311
    %v397 = vunpack.c.h.b16 %v311
    %v398 = vunpack.c.l.b16 %v312
    %v399 = vunpack.c.l.b16 %v313
    %v400 = vunpack.c.h.b16 %v313
    %v401 = vunpack.c.l.b16 %v314
    %v402 = vunpack.c.l.b16 %v315
    %v403 = vunpack.c.h.b16 %v315
    %v404 = vunpack.c.l.b16 %v316
    %v405 = vunpack.c.l.b16 %v317
    %v406 = vunpack.c.h.b16 %v317
    %v407 = vunpack.c.l.b16 %v318
    %v408 = vunpack.c.l.b16 %v319
    %v409 = vunpack.c.h.b16 %v319
    %v410 = vunpack.c.l.b16 %v320
    %v411 = vunpack.c.l.b16 %v321
    %v412 = vunpack.c.h.b16 %v321
    %v413 = vunpack.c.l.b16 %v322
    %v414 = vunpack.c.l.b16 %v323
    %v415 = vunpack.c.h.b16 %v323
    %v416 = vunpack.c.l.b16 %v324
    %v417 = vunpack.c.l.b16 %v325
    %v418 = vunpack.c.h.b16 %v325
    %v419 = vunpack.c.l.b16 %v326
    %v420 = vunpack.c.l.b16 %v327
    %v421 = vunpack.c.h.b16 %v327
    %v422 = vunpack.c.l.b16 %v328
    %v423 = vunpack.c.l.b16 %v329
    %v424 = vunpack.c.h.b16 %v329
    %v425 = vunpack.c.l.b16 %v330
    %v426 = vpack.c.b16 %v381, %v378
    %v427 = vpack.c.b16 %v382, %v379
    %v428 = vpack.c.b16 %v383, %v380
    %v429 = vpack.c.b16 %v387, %v384
    %v430 = vpack.c.b16 %v388, %v385
    %v431 = vpack.c.b16 %v389, %v386
    %v432 = vpack.c.b16 %v393, %v390
    %v433 = vpack.c.b16 %v394, %v391
    %v434 = vpack.c.b16 %v395, %v392
    %v435 = vpack.c.b16 %v399, %v396
    %v436 = vpack.c.b16 %v400, %v397
    %v437 = vpack.c.b16 %v401, %v398
    %v438 = vpack.c.b16 %v405, %v402
    %v439 = vpack.c.b16 %v406, %v403
    %v440 = vpack.c.b16 %v407, %v404
    %v441 = vpack.c.b16 %v411, %v408
    %v442 = vpack.c.b16 %v412, %v409
    %v443 = vpack.c.b16 %v413, %v410
    %v444 = vpack.c.b16 %v417, %v414
    %v445 = vpack.c.b16 %v418, %v415
    %v446 = vpack.c.b16 %v419, %v416
    %v447 = vpack.c.b16 %v423, %v420
    %v448 = vpack.c.b16 %v424, %v421
    %v449 = vpack.c.b16 %v425, %v422
    %474 = vmatprep.subr.bf16.mxu0 %v427
    %475 = vmatpush1.bf16.msra.mxu0 %v426
    %476 = vmatprep.subr.bf16.mxu0 %v430
    %477 = vmatpush1.bf16.msra.mxu0 %v429
    %478 = vmatprep.subr.bf16.mxu0 %v433
    %479 = vmatpush1.bf16.msra.mxu0 %v432
    %480 = vmatprep.subr.bf16.mxu0 %v436
    %481 = vmatpush1.bf16.msra.mxu0 %v435
    %482 = vmatprep.subr.bf16.mxu0 %v439
    %483 = vmatpush1.bf16.msra.mxu0 %v438
    %484 = vmatprep.subr.bf16.mxu0 %v442
    %485 = vmatpush1.bf16.msra.mxu0 %v441
    %486 = vmatprep.subr.bf16.mxu0 %v445
    %487 = vmatpush1.bf16.msra.mxu0 %v444
    %488 = vmatprep.subr.bf16.mxu0 %v448
    %489 = vmatpush1.bf16.msra.mxu0 %v447
    %490 = vmatprep.subr.bf16.mxu0 0
    %491 = vmatpush1.bf16.msra.mxu0 0
    %492 = vmatprep.subr.bf16.mxu0 0
    %493 = vmatpush1.bf16.msra.mxu0 0
    %494 = vmatprep.subr.bf16.mxu0 0
    %495 = vmatpush1.bf16.msra.mxu0 0
    %496 = vmatprep.subr.bf16.mxu0 0
    %497 = vmatpush1.bf16.msra.mxu0 0
    %498 = vmatprep.subr.bf16.mxu0 0
    %499 = vmatpush1.bf16.msra.mxu0 0
    %500 = vmatprep.subr.bf16.mxu0 0
    %501 = vmatpush1.bf16.msra.mxu0 0
    %502 = vmatprep.subr.bf16.mxu0 0
    %503 = vmatpush1.bf16.msra.mxu0 0
    %504 = vmatprep.subr.bf16.mxu0 0
    %505 = vmatpush1.bf16.msra.mxu0 0
    %506 = vmatprep.mubr.bf16.mxu0 0
    %507 = vmatmul.mubr.bf16.gmra.mrb[0].mxu0 %v345
    %v508 = vpop.f32.mrb[0].mxu0
    %v509 = vadd.f32 0.0, %v508
    %v510 = vpop.f32.mrb[0].mxu0
    %v511 = vadd.f32 0.0, %v510
    %v512 = vpop.f32.mrb[0].mxu0
    %v513 = vpop.f32.mrb[0].mxu0
    %514 = vdwg.mxu0
    %515 = vmatprep.subr.bf16.mxu0 0
    %516 = vmatpush1.bf16.msra.mxu0 %v428
    %517 = vmatprep.subr.bf16.mxu0 0
    %518 = vmatpush1.bf16.msra.mxu0 %v431
    %519 = vmatprep.subr.bf16.mxu0 0
    %520 = vmatpush1.bf16.msra.mxu0 %v434
    %521 = vmatprep.subr.bf16.mxu0 0
    %522 = vmatpush1.bf16.msra.mxu0 %v437
    %523 = vmatprep.subr.bf16.mxu0 0
    %524 = vmatpush1.bf16.msra.mxu0 %v440
    %525 = vmatprep.subr.bf16.mxu0 0
    %526 = vmatpush1.bf16.msra.mxu0 %v443
    %527 = vmatprep.subr.bf16.mxu0 0
    %528 = vmatpush1.bf16.msra.mxu0 %v446
    %529 = vmatprep.subr.bf16.mxu0 0
    %530 = vmatpush1.bf16.msra.mxu0 %v449
    %531 = vmatprep.subr.bf16.mxu0 0
    %532 = vmatpush1.bf16.msra.mxu0 0
    %533 = vmatprep.subr.bf16.mxu0 0
    %534 = vmatpush1.bf16.msra.mxu0 0
    %535 = vmatprep.subr.bf16.mxu0 0
    %536 = vmatpush1.bf16.msra.mxu0 0
    %537 = vmatprep.subr.bf16.mxu0 0
    %538 = vmatpush1.bf16.msra.mxu0 0
    %539 = vmatprep.subr.bf16.mxu0 0
    %540 = vmatpush1.bf16.msra.mxu0 0
    %541 = vmatprep.subr.bf16.mxu0 0
    %542 = vmatpush1.bf16.msra.mxu0 0
    %543 = vmatprep.subr.bf16.mxu0 0
    %544 = vmatpush1.bf16.msra.mxu0 0
    %545 = vmatprep.subr.bf16.mxu0 0
    %546 = vmatpush1.bf16.msra.mxu0 0
    %547 = vmatprep.mubr.bf16.mxu0 0
    %548 = vmatmul.mubr.bf16.gmra.mrb[0].mxu0 %v345
    %v549 = vpop.f32.mrb[0].mxu0
    %v550 = vadd.f32 0.0, %v549
    %v551 = vpop.f32.mrb[0].mxu0
    %v552 = vpop.f32.mrb[0].mxu0
    %v553 = vpop.f32.mrb[0].mxu0
    %554 = vdwg.mxu0
    %v555 = vadd.f32 %v342, %v509
    %v556 = vadd.f32 %v343, %v511
    %v557 = vxor.u32 %v555, 2147483648
    %v558 = vxor.u32 %v556, 2147483648
    %v559 = vmul.f32 %v557, 1.442695
    %v560 = vpow.pop %v559
    %v561 = vmul.f32 %v558, 1.442695
    %v562 = vpow.pop %v561
    %v563 = vadd.f32 %v560, 1.0
    %v564 = vadd.f32 %v562, 1.0
    %v565 = vrcp.pop %v563
    %v566 = vmul.f32 1.0, %v565
    %v567 = vrcp.pop %v564
    %v568 = vmul.f32 1.0, %v567
    %v569 = vadd.f32 %v550, %v336
    %v570 = vmul.f32 %v566, %v569
    %v571 = vadd.f32 %v344, %v570
    %v572 = vtanh.pop %v571
    %v573 = vsub.f32 1.0, %v568
    %v574 = vmul.f32 %v573, %v572
    %v575 = vmul.f32 %v568, %v338
    %v576 = vadd.f32 %v574, %v575
    %577 = vst [vmem:[#allocation4] sm:$0xff] %v576
    %s578 = smul.u32 1, 3
    %s579 = smul.addr %s578, 8
    %s580 = scalar_lea.vmem [#allocation3], %s579
    %v581 = vld [vmem:[%s580] sm:$0xff]
    %v582 = vld [vmem:[%s580 + $0x8] sm:$0xff]
    %v583 = vld [vmem:[%s580 + $0x10] sm:$0xff]
    %v584 = vpack.c.bf16 %v576, %v576
    %585 = vmatprep.subr.bf16.mxu0 %v427
    %586 = vmatpush1.bf16.msra.mxu0 %v426
    %587 = vmatprep.subr.bf16.mxu0 %v430
    %588 = vmatpush1.bf16.msra.mxu0 %v429
    %589 = vmatprep.subr.bf16.mxu0 %v433
    %590 = vmatpush1.bf16.msra.mxu0 %v432
    %591 = vmatprep.subr.bf16.mxu0 %v436
    %592 = vmatpush1.bf16.msra.mxu0 %v435
    %593 = vmatprep.subr.bf16.mxu0 %v439
    %594 = vmatpush1.bf16.msra.mxu0 %v438
    %595 = vmatprep.subr.bf16.mxu0 %v442
    %596 = vmatpush1.bf16.msra.mxu0 %v441
    %597 = vmatprep.subr.bf16.mxu0 %v445
    %598 = vmatpush1.bf16.msra.mxu0 %v444
    %599 = vmatprep.subr.bf16.mxu0 %v448
    %600 = vmatpush1.bf16.msra.mxu0 %v447
    %601 = vmatprep.subr.bf16.mxu0 0
    %602 = vmatpush1.bf16.msra.mxu0 0
    %603 = vmatprep.subr.bf16.mxu0 0
    %604 = vmatpush1.bf16.msra.mxu0 0
    %605 = vmatprep.subr.bf16.mxu0 0
    %606 = vmatpush1.bf16.msra.mxu0 0
    %607 = vmatprep.subr.bf16.mxu0 0
    %608 = vmatpush1.bf16.msra.mxu0 0
    %609 = vmatprep.subr.bf16.mxu0 0
    %610 = vmatpush1.bf16.msra.mxu0 0
    %611 = vmatprep.subr.bf16.mxu0 0
    %612 = vmatpush1.bf16.msra.mxu0 0
    %613 = vmatprep.subr.bf16.mxu0 0
    %614 = vmatpush1.bf16.msra.mxu0 0
    %615 = vmatprep.subr.bf16.mxu0 0
    %616 = vmatpush1.bf16.msra.mxu0 0
    %617 = vmatprep.mubr.bf16.mxu0 0
    %618 = vmatmul.mubr.bf16.gmra.mrb[0].mxu0 %v584
    %v619 = vpop.f32.mrb[0].mxu0
    %v620 = vadd.f32 0.0, %v619
    %v621 = vpop.f32.mrb[0].mxu0
    %v622 = vadd.f32 0.0, %v621
    %v623 = vpop.f32.mrb[0].mxu0
    %v624 = vpop.f32.mrb[0].mxu0
    %625 = vdwg.mxu0
    %626 = vmatprep.subr.bf16.mxu0 0
    %627 = vmatpush1.bf16.msra.mxu0 %v428
    %628 = vmatprep.subr.bf16.mxu0 0
    %629 = vmatpush1.bf16.msra.mxu0 %v431
    %630 = vmatprep.subr.bf16.mxu0 0
    %631 = vmatpush1.bf16.msra.mxu0 %v434
    %632 = vmatprep.subr.bf16.mxu0 0
    %633 = vmatpush1.bf16.msra.mxu0 %v437
    %634 = vmatprep.subr.bf16.mxu0 0
    %635 = vmatpush1.bf16.msra.mxu0 %v440
    %636 = vmatprep.subr.bf16.mxu0 0
    %637 = vmatpush1.bf16.msra.mxu0 %v443
    %638 = vmatprep.subr.bf16.mxu0 0
    %639 = vmatpush1.bf16.msra.mxu0 %v446
    %640 = vmatprep.subr.bf16.mxu0 0
    %641 = vmatpush1.bf16.msra.mxu0 %v449
    %642 = vmatprep.subr.bf16.mxu0 0
    %643 = vmatpush1.bf16.msra.mxu0 0
    %644 = vmatprep.subr.bf16.mxu0 0
    %645 = vmatpush1.bf16.msra.mxu0 0
    %646 = vmatprep.subr.bf16.mxu0 0
    %647 = vmatpush1.bf16.msra.mxu0 0
    %648 = vmatprep.subr.bf16.mxu0 0
    %649 = vmatpush1.bf16.msra.mxu0 0
    %650 = vmatprep.subr.bf16.mxu0 0
    %651 = vmatpush1.bf16.msra.mxu0 0
    %652 = vmatprep.subr.bf16.mxu0 0
    %653 = vmatpush1.bf16.msra.mxu0 0
    %654 = vmatprep.subr.bf16.mxu0 0
    %655 = vmatpush1.bf16.msra.mxu0 0
    %656 = vmatprep.subr.bf16.mxu0 0
    %657 = vmatpush1.bf16.msra.mxu0 0
    %658 = vmatprep.mubr.bf16.mxu0 0
    %659 = vmatmul.mubr.bf16.gmra.mrb[0].mxu0 %v584
    %v660 = vpop.f32.mrb[0].mxu0
    %v661 = vadd.f32 0.0, %v660
    %v662 = vpop.f32.mrb[0].mxu0
    %v663 = vpop.f32.mrb[0].mxu0
    %v664 = vpop.f32.mrb[0].mxu0
    %665 = vdwg.mxu0
    %v666 = vadd.f32 %v581, %v620
    %v667 = vadd.f32 %v582, %v622
    %v668 = vxor.u32 %v666, 2147483648
    %v669 = vxor.u32 %v667, 2147483648
    %v670 = vmul.f32 %v668, 1.442695
    %v671 = vpow.pop %v670
    %v672 = vmul.f32 %v669, 1.442695
    %v673 = vpow.pop %v672
    %v674 = vadd.f32 %v671, 1.0
    %v675 = vadd.f32 %v673, 1.0
    %v676 = vrcp.pop %v674
    %v677 = vmul.f32 1.0, %v676
    %v678 = vrcp.pop %v675
    %v679 = vmul.f32 1.0, %v678
    %v680 = vadd.f32 %v661, %v336
    %v681 = vmul.f32 %v677, %v680
    %v682 = vadd.f32 %v583, %v681
    %v683 = vtanh.pop %v682
    %v684 = vsub.f32 1.0, %v679
    %v685 = vmul.f32 %v684, %v683
    %v686 = vmul.f32 %v679, %v576
    %v687 = vadd.f32 %v685, %v686
    %s688 = scalar_lea.vmem [#allocation4], 8
    %689 = vst [vmem:[%s688] sm:$0xff] %v687
    %s690 = smul.u32 2, 3
    %s691 = smul.addr %s690, 8
    %s692 = scalar_lea.vmem [#allocation3], %s691
    %v693 = vld [vmem:[%s692] sm:$0xff]
    %v694 = vld [vmem:[%s692 + $0x8] sm:$0xff]
    %v695 = vld [vmem:[%s692 + $0x10] sm:$0xff]
    %v696 = vpack.c.bf16 %v687, %v687
    %697 = vmatprep.subr.bf16.mxu0 %v427
    %698 = vmatpush1.bf16.msra.mxu0 %v426
    %699 = vmatprep.subr.bf16.mxu0 %v430
    %700 = vmatpush1.bf16.msra.mxu0 %v429
    %701 = vmatprep.subr.bf16.mxu0 %v433
    %702 = vmatpush1.bf16.msra.mxu0 %v432
    %703 = vmatprep.subr.bf16.mxu0 %v436
    %704 = vmatpush1.bf16.msra.mxu0 %v435
    %705 = vmatprep.subr.bf16.mxu0 %v439
    %706 = vmatpush1.bf16.msra.mxu0 %v438
    %707 = vmatprep.subr.bf16.mxu0 %v442
    %708 = vmatpush1.bf16.msra.mxu0 %v441
    %709 = vmatprep.subr.bf16.mxu0 %v445
    %710 = vmatpush1.bf16.msra.mxu0 %v444
    %711 = vmatprep.subr.bf16.mxu0 %v448
    %712 = vmatpush1.bf16.msra.mxu0 %v447
    %713 = vmatprep.subr.bf16.mxu0 0
    %714 = vmatpush1.bf16.msra.mxu0 0
    %715 = vmatprep.subr.bf16.mxu0 0
    %716 = vmatpush1.bf16.msra.mxu0 0
    %717 = vmatprep.subr.bf16.mxu0 0
    %718 = vmatpush1.bf16.msra.mxu0 0
    %719 = vmatprep.subr.bf16.mxu0 0
    %720 = vmatpush1.bf16.msra.mxu0 0
    %721 = vmatprep.subr.bf16.mxu0 0
    %722 = vmatpush1.bf16.msra.mxu0 0
    %723 = vmatprep.subr.bf16.mxu0 0
    %724 = vmatpush1.bf16.msra.mxu0 0
    %725 = vmatprep.subr.bf16.mxu0 0
    %726 = vmatpush1.bf16.msra.mxu0 0
    %727 = vmatprep.subr.bf16.mxu0 0
    %728 = vmatpush1.bf16.msra.mxu0 0
    %729 = vmatprep.mubr.bf16.mxu0 0
    %730 = vmatmul.mubr.bf16.gmra.mrb[0].mxu0 %v696
    %v731 = vpop.f32.mrb[0].mxu0
    %v732 = vadd.f32 0.0, %v731
    %v733 = vpop.f32.mrb[0].mxu0
    %v734 = vadd.f32 0.0, %v733
    %v735 = vpop.f32.mrb[0].mxu0
    %v736 = vpop.f32.mrb[0].mxu0
    %737 = vdwg.mxu0
    %738 = vmatprep.subr.bf16.mxu0 0
    %739 = vmatpush1.bf16.msra.mxu0 %v428
    %740 = vmatprep.subr.bf16.mxu0 0
    %741 = vmatpush1.bf16.msra.mxu0 %v431
    %742 = vmatprep.subr.bf16.mxu0 0
    %743 = vmatpush1.bf16.msra.mxu0 %v434
    %744 = vmatprep.subr.bf16.mxu0 0
    %745 = vmatpush1.bf16.msra.mxu0 %v437
    %746 = vmatprep.subr.bf16.mxu0 0
    %747 = vmatpush1.bf16.msra.mxu0 %v440
    %748 = vmatprep.subr.bf16.mxu0 0
    %749 = vmatpush1.bf16.msra.mxu0 %v443
    %750 = vmatprep.subr.bf16.mxu0 0
    %751 = vmatpush1.bf16.msra.mxu0 %v446
    %752 = vmatprep.subr.bf16.mxu0 0
    %753 = vmatpush1.bf16.msra.mxu0 %v449
    %754 = vmatprep.subr.bf16.mxu0 0
    %755 = vmatpush1.bf16.msra.mxu0 0
    %756 = vmatprep.subr.bf16.mxu0 0
    %757 = vmatpush1.bf16.msra.mxu0 0
    %758 = vmatprep.subr.bf16.mxu0 0
    %759 = vmatpush1.bf16.msra.mxu0 0
    %760 = vmatprep.subr.bf16.mxu0 0
    %761 = vmatpush1.bf16.msra.mxu0 0
    %762 = vmatprep.subr.bf16.mxu0 0
    %763 = vmatpush1.bf16.msra.mxu0 0
    %764 = vmatprep.subr.bf16.mxu0 0
    %765 = vmatpush1.bf16.msra.mxu0 0
    %766 = vmatprep.subr.bf16.mxu0 0
    %767 = vmatpush1.bf16.msra.mxu0 0
    %768 = vmatprep.subr.bf16.mxu0 0
    %769 = vmatpush1.bf16.msra.mxu0 0
    %770 = vmatprep.mubr.bf16.mxu0 0
    %771 = vmatmul.mubr.bf16.gmra.mrb[0].mxu0 %v696
    %v772 = vpop.f32.mrb[0].mxu0
    %v773 = vadd.f32 0.0, %v772
    %v774 = vpop.f32.mrb[0].mxu0
    %v775 = vpop.f32.mrb[0].mxu0
    %v776 = vpop.f32.mrb[0].mxu0
    %777 = vdwg.mxu0
    %v778 = vadd.f32 %v693, %v732
    %v779 = vadd.f32 %v694, %v734
    %v780 = vxor.u32 %v778, 2147483648
    %v781 = vxor.u32 %v779, 2147483648
    %v782 = vmul.f32 %v780, 1.442695
    %v783 = vpow.pop %v782
    %v784 = vmul.f32 %v781, 1.442695
    %v785 = vpow.pop %v784
    %v786 = vadd.f32 %v783, 1.0
    %v787 = vadd.f32 %v785, 1.0
    %v788 = vrcp.pop %v786
    %v789 = vmul.f32 1.0, %v788
    %v790 = vrcp.pop %v787
    %v791 = vmul.f32 1.0, %v790
    %v792 = vadd.f32 %v773, %v336
    %v793 = vmul.f32 %v789, %v792
    %v794 = vadd.f32 %v695, %v793
    %v795 = vtanh.pop %v794
    %v796 = vsub.f32 1.0, %v791
    %v797 = vmul.f32 %v796, %v795
    %v798 = vmul.f32 %v791, %v687
    %v799 = vadd.f32 %v797, %v798
    %s800 = scalar_lea.vmem [#allocation4], 16
    %801 = vst [vmem:[%s800] sm:$0xff] %v799
    %s802 = smul.u32 3, 3
    %s803 = smul.addr %s802, 8
    %s804 = scalar_lea.vmem [#allocation3], %s803
    %v805 = vld [vmem:[%s804] sm:$0xff]
    %v806 = vld [vmem:[%s804 + $0x8] sm:$0xff]
    %v807 = vld [vmem:[%s804 + $0x10] sm:$0xff]
    %v808 = vpack.c.bf16 %v799, %v799
    %809 = vmatprep.subr.bf16.mxu0 %v427
    %810 = vmatpush1.bf16.msra.mxu0 %v426
    %811 = vmatprep.subr.bf16.mxu0 %v430
    %812 = vmatpush1.bf16.msra.mxu0 %v429
    %813 = vmatprep.subr.bf16.mxu0 %v433
    %814 = vmatpush1.bf16.msra.mxu0 %v432
    %815 = vmatprep.subr.bf16.mxu0 %v436
    %816 = vmatpush1.bf16.msra.mxu0 %v435
    %817 = vmatprep.subr.bf16.mxu0 %v439
    %818 = vmatpush1.bf16.msra.mxu0 %v438
    %819 = vmatprep.subr.bf16.mxu0 %v442
    %820 = vmatpush1.bf16.msra.mxu0 %v441
    %821 = vmatprep.subr.bf16.mxu0 %v445
    %822 = vmatpush1.bf16.msra.mxu0 %v444
    %823 = vmatprep.subr.bf16.mxu0 %v448
    %824 = vmatpush1.bf16.msra.mxu0 %v447
    %825 = vmatprep.subr.bf16.mxu0 0
    %826 = vmatpush1.bf16.msra.mxu0 0
    %827 = vmatprep.subr.bf16.mxu0 0
    %828 = vmatpush1.bf16.msra.mxu0 0
    %829 = vmatprep.subr.bf16.mxu0 0
    %830 = vmatpush1.bf16.msra.mxu0 0
    %831 = vmatprep.subr.bf16.mxu0 0
    %832 = vmatpush1.bf16.msra.mxu0 0
    %833 = vmatprep.subr.bf16.mxu0 0
    %834 = vmatpush1.bf16.msra.mxu0 0
    %835 = vmatprep.subr.bf16.mxu0 0
    %836 = vmatpush1.bf16.msra.mxu0 0
    %837 = vmatprep.subr.bf16.mxu0 0
    %838 = vmatpush1.bf16.msra.mxu0 0
    %839 = vmatprep.subr.bf16.mxu0 0
    %840 = vmatpush1.bf16.msra.mxu0 0
    %841 = vmatprep.mubr.bf16.mxu0 0
    %842 = vmatmul.mubr.bf16.gmra.mrb[0].mxu0 %v808
    %v843 = vpop.f32.mrb[0].mxu0
    %v844 = vadd.f32 0.0, %v843
    %v845 = vpop.f32.mrb[0].mxu0
    %v846 = vadd.f32 0.0, %v845
    %v847 = vpop.f32.mrb[0].mxu0
    %v848 = vpop.f32.mrb[0].mxu0
    %849 = vdwg.mxu0
    %850 = vmatprep.subr.bf16.mxu0 0
    %851 = vmatpush1.bf16.msra.mxu0 %v428
    %852 = vmatprep.subr.bf16.mxu0 0
    %853 = vmatpush1.bf16.msra.mxu0 %v431
    %854 = vmatprep.subr.bf16.mxu0 0
    %855 = vmatpush1.bf16.msra.mxu0 %v434
    %856 = vmatprep.subr.bf16.mxu0 0
    %857 = vmatpush1.bf16.msra.mxu0 %v437
    %858 = vmatprep.subr.bf16.mxu0 0
    %859 = vmatpush1.bf16.msra.mxu0 %v440
    %860 = vmatprep.subr.bf16.mxu0 0
    %861 = vmatpush1.bf16.msra.mxu0 %v443
    %862 = vmatprep.subr.bf16.mxu0 0
    %863 = vmatpush1.bf16.msra.mxu0 %v446
    %864 = vmatprep.subr.bf16.mxu0 0
    %865 = vmatpush1.bf16.msra.mxu0 %v449
    %866 = vmatprep.subr.bf16.mxu0 0
    %867 = vmatpush1.bf16.msra.mxu0 0
    %868 = vmatprep.subr.bf16.mxu0 0
    %869 = vmatpush1.bf16.msra.mxu0 0
    %870 = vmatprep.subr.bf16.mxu0 0
    %871 = vmatpush1.bf16.msra.mxu0 0
    %872 = vmatprep.subr.bf16.mxu0 0
    %873 = vmatpush1.bf16.msra.mxu0 0
    %874 = vmatprep.subr.bf16.mxu0 0
    %875 = vmatpush1.bf16.msra.mxu0 0
    %876 = vmatprep.subr.bf16.mxu0 0
    %877 = vmatpush1.bf16.msra.mxu0 0
    %878 = vmatprep.subr.bf16.mxu0 0
    %879 = vmatpush1.bf16.msra.mxu0 0
    %880 = vmatprep.subr.bf16.mxu0 0
    %881 = vmatpush1.bf16.msra.mxu0 0
    %882 = vmatprep.mubr.bf16.mxu0 0
    %883 = vmatmul.mubr.bf16.gmra.mrb[0].mxu0 %v808
    %v884 = vpop.f32.mrb[0].mxu0
    %v885 = vadd.f32 0.0, %v884
    %v886 = vpop.f32.mrb[0].mxu0
    %v887 = vpop.f32.mrb[0].mxu0
    %v888 = vpop.f32.mrb[0].mxu0
    %889 = vdwg.mxu0
    %v890 = vadd.f32 %v805, %v844
    %v891 = vadd.f32 %v806, %v846
    %v892 = vxor.u32 %v890, 2147483648
    %v893 = vxor.u32 %v891, 2147483648
    %v894 = vmul.f32 %v892, 1.442695
    %v895 = vpow.pop %v894
    %v896 = vmul.f32 %v893, 1.442695
    %v897 = vpow.pop %v896
    %v898 = vadd.f32 %v895, 1.0
    %v899 = vadd.f32 %v897, 1.0
    %v900 = vrcp.pop %v898
    %v901 = vmul.f32 1.0, %v900
    %v902 = vrcp.pop %v899
    %v903 = vmul.f32 1.0, %v902
    %v904 = vadd.f32 %v885, %v336
    %v905 = vmul.f32 %v901, %v904
    %v906 = vadd.f32 %v807, %v905
    %v907 = vtanh.pop %v906
    %v908 = vsub.f32 1.0, %v903
    %v909 = vmul.f32 %v908, %v907
    %v910 = vmul.f32 %v903, %v799
    %v911 = vadd.f32 %v909, %v910
    %s912 = scalar_lea.vmem [#allocation4], 24
    %913 = vst [vmem:[%s912] sm:$0xff] %v911
    %s914 = smul.u32 4, 3
    %s915 = smul.addr %s914, 8
    %s916 = scalar_lea.vmem [#allocation3], %s915
    %v917 = vld [vmem:[%s916] sm:$0xff]
    %v918 = vld [vmem:[%s916 + $0x8] sm:$0xff]
    %v919 = vld [vmem:[%s916 + $0x10] sm:$0xff]
    %v920 = vpack.c.bf16 %v911, %v911
    %921 = vmatprep.subr.bf16.mxu0 %v427
    %922 = vmatpush1.bf16.msra.mxu0 %v426
    %923 = vmatprep.subr.bf16.mxu0 %v430
    %924 = vmatpush1.bf16.msra.mxu0 %v429
    %925 = vmatprep.subr.bf16.mxu0 %v433
    %926 = vmatpush1.bf16.msra.mxu0 %v432
    %927 = vmatprep.subr.bf16.mxu0 %v436
    %928 = vmatpush1.bf16.msra.mxu0 %v435
    %929 = vmatprep.subr.bf16.mxu0 %v439
    %930 = vmatpush1.bf16.msra.mxu0 %v438
    %931 = vmatprep.subr.bf16.mxu0 %v442
    %932 = vmatpush1.bf16.msra.mxu0 %v441
    %933 = vmatprep.subr.bf16.mxu0 %v445
    %934 = vmatpush1.bf16.msra.mxu0 %v444
    %935 = vmatprep.subr.bf16.mxu0 %v448
    %936 = vmatpush1.bf16.msra.mxu0 %v447
    %937 = vmatprep.subr.bf16.mxu0 0
    %938 = vmatpush1.bf16.msra.mxu0 0
    %939 = vmatprep.subr.bf16.mxu0 0
    %940 = vmatpush1.bf16.msra.mxu0 0
    %941 = vmatprep.subr.bf16.mxu0 0
    %942 = vmatpush1.bf16.msra.mxu0 0
    %943 = vmatprep.subr.bf16.mxu0 0
    %944 = vmatpush1.bf16.msra.mxu0 0
    %945 = vmatprep.subr.bf16.mxu0 0
    %946 = vmatpush1.bf16.msra.mxu0 0
    %947 = vmatprep.subr.bf16.mxu0 0
    %948 = vmatpush1.bf16.msra.mxu0 0
    %949 = vmatprep.subr.bf16.mxu0 0
    %950 = vmatpush1.bf16.msra.mxu0 0
    %951 = vmatprep.subr.bf16.mxu0 0
    %952 = vmatpush1.bf16.msra.mxu0 0
    %953 = vmatprep.mubr.bf16.mxu0 0
    %954 = vmatmul.mubr.bf16.gmra.mrb[0].mxu0 %v920
    %v955 = vpop.f32.mrb[0].mxu0
    %v956 = vadd.f32 0.0, %v955
    %v957 = vpop.f32.mrb[0].mxu0
    %v958 = vadd.f32 0.0, %v957
    %v959 = vpop.f32.mrb[0].mxu0
    %v960 = vpop.f32.mrb[0].mxu0
    %961 = vdwg.mxu0
    %962 = vmatprep.subr.bf16.mxu0 0
    %963 = vmatpush1.bf16.msra.mxu0 %v428
    %964 = vmatprep.subr.bf16.mxu0 0
    %965 = vmatpush1.bf16.msra.mxu0 %v431
    %966 = vmatprep.subr.bf16.mxu0 0
    %967 = vmatpush1.bf16.msra.mxu0 %v434
    %968 = vmatprep.subr.bf16.mxu0 0
    %969 = vmatpush1.bf16.msra.mxu0 %v437
    %970 = vmatprep.subr.bf16.mxu0 0
    %971 = vmatpush1.bf16.msra.mxu0 %v440
    %972 = vmatprep.subr.bf16.mxu0 0
    %973 = vmatpush1.bf16.msra.mxu0 %v443
    %974 = vmatprep.subr.bf16.mxu0 0
    %975 = vmatpush1.bf16.msra.mxu0 %v446
    %976 = vmatprep.subr.bf16.mxu0 0
    %977 = vmatpush1.bf16.msra.mxu0 %v449
    %978 = vmatprep.subr.bf16.mxu0 0
    %979 = vmatpush1.bf16.msra.mxu0 0
    %980 = vmatprep.subr.bf16.mxu0 0
    %981 = vmatpush1.bf16.msra.mxu0 0
    %982 = vmatprep.subr.bf16.mxu0 0
    %983 = vmatpush1.bf16.msra.mxu0 0
    %984 = vmatprep.subr.bf16.mxu0 0
    %985 = vmatpush1.bf16.msra.mxu0 0
    %986 = vmatprep.subr.bf16.mxu0 0
    %987 = vmatpush1.bf16.msra.mxu0 0
    %988 = vmatprep.subr.bf16.mxu0 0
    %989 = vmatpush1.bf16.msra.mxu0 0
    %990 = vmatprep.subr.bf16.mxu0 0
    %991 = vmatpush1.bf16.msra.mxu0 0
    %992 = vmatprep.subr.bf16.mxu0 0
    %993 = vmatpush1.bf16.msra.mxu0 0
    %994 = vmatprep.mubr.bf16.mxu0 0
    %995 = vmatmul.mubr.bf16.gmra.mrb[0].mxu0 %v920
    %v996 = vpop.f32.mrb[0].mxu0
    %v997 = vadd.f32 0.0, %v996
    %v998 = vpop.f32.mrb[0].mxu0
    %v999 = vpop.f32.mrb[0].mxu0
    %v1000 = vpop.f32.mrb[0].mxu0
    %1001 = vdwg.mxu0
    %v1002 = vadd.f32 %v917, %v956
    %v1003 = vadd.f32 %v918, %v958
    %v1004 = vxor.u32 %v1002, 2147483648
    %v1005 = vxor.u32 %v1003, 2147483648
    %v1006 = vmul.f32 %v1004, 1.442695
    %v1007 = vpow.pop %v1006
    %v1008 = vmul.f32 %v1005, 1.442695
    %v1009 = vpow.pop %v1008
    %v1010 = vadd.f32 %v1007, 1.0
    %v1011 = vadd.f32 %v1009, 1.0
    %v1012 = vrcp.pop %v1010
    %v1013 = vmul.f32 1.0, %v1012
    %v1014 = vrcp.pop %v1011
    %v1015 = vmul.f32 1.0, %v1014
    %v1016 = vadd.f32 %v997, %v336
    %v1017 = vmul.f32 %v1013, %v1016
    %v1018 = vadd.f32 %v919, %v1017
    %v1019 = vtanh.pop %v1018
    %v1020 = vsub.f32 1.0, %v1015
    %v1021 = vmul.f32 %v1020, %v1019
    %v1022 = vmul.f32 %v1015, %v911
    %v1023 = vadd.f32 %v1021, %v1022
    %s1024 = scalar_lea.vmem [#allocation4], 32
    %1025 = vst [vmem:[%s1024] sm:$0xff] %v1023
    %s1026 = smul.u32 5, 3
    %s1027 = smul.addr %s1026, 8
    %s1028 = scalar_lea.vmem [#allocation3], %s1027
    %v1029 = vld [vmem:[%s1028] sm:$0xff]
    %v1030 = vld [vmem:[%s1028 + $0x8] sm:$0xff]
    %v1031 = vld [vmem:[%s1028 + $0x10] sm:$0xff]
    %v1032 = vpack.c.bf16 %v1023, %v1023
    %1033 = vmatprep.subr.bf16.mxu0 %v427
    %1034 = vmatpush1.bf16.msra.mxu0 %v426
    %1035 = vmatprep.subr.bf16.mxu0 %v430
    %1036 = vmatpush1.bf16.msra.mxu0 %v429
    %1037 = vmatprep.subr.bf16.mxu0 %v433
    %1038 = vmatpush1.bf16.msra.mxu0 %v432
    %1039 = vmatprep.subr.bf16.mxu0 %v436
    %1040 = vmatpush1.bf16.msra.mxu0 %v435
    %1041 = vmatprep.subr.bf16.mxu0 %v439
    %1042 = vmatpush1.bf16.msra.mxu0 %v438
    %1043 = vmatprep.subr.bf16.mxu0 %v442
    %1044 = vmatpush1.bf16.msra.mxu0 %v441
    %1045 = vmatprep.subr.bf16.mxu0 %v445
    %1046 = vmatpush1.bf16.msra.mxu0 %v444
    %1047 = vmatprep.subr.bf16.mxu0 %v448
    %1048 = vmatpush1.bf16.msra.mxu0 %v447
    %1049 = vmatprep.subr.bf16.mxu0 0
    %1050 = vmatpush1.bf16.msra.mxu0 0
    %1051 = vmatprep.subr.bf16.mxu0 0
    %1052 = vmatpush1.bf16.msra.mxu0 0
    %1053 = vmatprep.subr.bf16.mxu0 0
    %1054 = vmatpush1.bf16.msra.mxu0 0
    %1055 = vmatprep.subr.bf16.mxu0 0
    %1056 = vmatpush1.bf16.msra.mxu0 0
    %1057 = vmatprep.subr.bf16.mxu0 0
    %1058 = vmatpush1.bf16.msra.mxu0 0
    %1059 = vmatprep.subr.bf16.mxu0 0
    %1060 = vmatpush1.bf16.msra.mxu0 0
    %1061 = vmatprep.subr.bf16.mxu0 0
    %1062 = vmatpush1.bf16.msra.mxu0 0
    %1063 = vmatprep.subr.bf16.mxu0 0
    %1064 = vmatpush1.bf16.msra.mxu0 0
    %1065 = vmatprep.mubr.bf16.mxu0 0
    %1066 = vmatmul.mubr.bf16.gmra.mrb[0].mxu0 %v1032
    %v1067 = vpop.f32.mrb[0].mxu0
    %v1068 = vadd.f32 0.0, %v1067
    %v1069 = vpop.f32.mrb[0].mxu0
    %v1070 = vadd.f32 0.0, %v1069
    %v1071 = vpop.f32.mrb[0].mxu0
    %v1072 = vpop.f32.mrb[0].mxu0
    %1073 = vdwg.mxu0
    %1074 = vmatprep.subr.bf16.mxu0 0
    %1075 = vmatpush1.bf16.msra.mxu0 %v428
    %1076 = vmatprep.subr.bf16.mxu0 0
    %1077 = vmatpush1.bf16.msra.mxu0 %v431
    %1078 = vmatprep.subr.bf16.mxu0 0
    %1079 = vmatpush1.bf16.msra.mxu0 %v434
    %1080 = vmatprep.subr.bf16.mxu0 0
    %1081 = vmatpush1.bf16.msra.mxu0 %v437
    %1082 = vmatprep.subr.bf16.mxu0 0
    %1083 = vmatpush1.bf16.msra.mxu0 %v440
    %1084 = vmatprep.subr.bf16.mxu0 0
    %1085 = vmatpush1.bf16.msra.mxu0 %v443
    %1086 = vmatprep.subr.bf16.mxu0 0
    %1087 = vmatpush1.bf16.msra.mxu0 %v446
    %1088 = vmatprep.subr.bf16.mxu0 0
    %1089 = vmatpush1.bf16.msra.mxu0 %v449
    %1090 = vmatprep.subr.bf16.mxu0 0
    %1091 = vmatpush1.bf16.msra.mxu0 0
    %1092 = vmatprep.subr.bf16.mxu0 0
    %1093 = vmatpush1.bf16.msra.mxu0 0
    %1094 = vmatprep.subr.bf16.mxu0 0
    %1095 = vmatpush1.bf16.msra.mxu0 0
    %1096 = vmatprep.subr.bf16.mxu0 0
    %1097 = vmatpush1.bf16.msra.mxu0 0
    %1098 = vmatprep.subr.bf16.mxu0 0
    %1099 = vmatpush1.bf16.msra.mxu0 0
    %1100 = vmatprep.subr.bf16.mxu0 0
    %1101 = vmatpush1.bf16.msra.mxu0 0
    %1102 = vmatprep.subr.bf16.mxu0 0
    %1103 = vmatpush1.bf16.msra.mxu0 0
    %1104 = vmatprep.subr.bf16.mxu0 0
    %1105 = vmatpush1.bf16.msra.mxu0 0
    %1106 = vmatprep.mubr.bf16.mxu0 0
    %1107 = vmatmul.mubr.bf16.gmra.mrb[0].mxu0 %v1032
    %v1108 = vpop.f32.mrb[0].mxu0
    %v1109 = vadd.f32 0.0, %v1108
    %v1110 = vpop.f32.mrb[0].mxu0
    %v1111 = vpop.f32.mrb[0].mxu0
    %v1112 = vpop.f32.mrb[0].mxu0
    %1113 = vdwg.mxu0
    %v1114 = vadd.f32 %v1029, %v1068
    %v1115 = vadd.f32 %v1030, %v1070
    %v1116 = vxor.u32 %v1114, 2147483648
    %v1117 = vxor.u32 %v1115, 2147483648
    %v1118 = vmul.f32 %v1116, 1.442695
    %v1119 = vpow.pop %v1118
    %v1120 = vmul.f32 %v1117, 1.442695
    %v1121 = vpow.pop %v1120
    %v1122 = vadd.f32 %v1119, 1.0
    %v1123 = vadd.f32 %v1121, 1.0
    %v1124 = vrcp.pop %v1122
    %v1125 = vmul.f32 1.0, %v1124
    %v1126 = vrcp.pop %v1123
    %v1127 = vmul.f32 1.0, %v1126
    %v1128 = vadd.f32 %v1109, %v336
    %v1129 = vmul.f32 %v1125, %v1128
    %v1130 = vadd.f32 %v1031, %v1129
    %v1131 = vtanh.pop %v1130
    %v1132 = vsub.f32 1.0, %v1127
    %v1133 = vmul.f32 %v1132, %v1131
    %v1134 = vmul.f32 %v1127, %v1023
    %v1135 = vadd.f32 %v1133, %v1134
    %s1136 = scalar_lea.vmem [#allocation4], 40
    %1137 = vst [vmem:[%s1136] sm:$0xff] %v1135
    %s1138 = smul.u32 6, 3
    %s1139 = smul.addr %s1138, 8
    %s1140 = scalar_lea.vmem [#allocation3], %s1139
    %v1141 = vld [vmem:[%s1140] sm:$0xff]
    %v1142 = vld [vmem:[%s1140 + $0x8] sm:$0xff]
    %v1143 = vld [vmem:[%s1140 + $0x10] sm:$0xff]
    %v1144 = vpack.c.bf16 %v1135, %v1135
    %1145 = vmatprep.subr.bf16.mxu0 %v427
    %1146 = vmatpush1.bf16.msra.mxu0 %v426
    %1147 = vmatprep.subr.bf16.mxu0 %v430
    %1148 = vmatpush1.bf16.msra.mxu0 %v429
    %1149 = vmatprep.subr.bf16.mxu0 %v433
    %1150 = vmatpush1.bf16.msra.mxu0 %v432
    %1151 = vmatprep.subr.bf16.mxu0 %v436
    %1152 = vmatpush1.bf16.msra.mxu0 %v435
    %1153 = vmatprep.subr.bf16.mxu0 %v439
    %1154 = vmatpush1.bf16.msra.mxu0 %v438
    %1155 = vmatprep.subr.bf16.mxu0 %v442
    %1156 = vmatpush1.bf16.msra.mxu0 %v441
    %1157 = vmatprep.subr.bf16.mxu0 %v445
    %1158 = vmatpush1.bf16.msra.mxu0 %v444
    %1159 = vmatprep.subr.bf16.mxu0 %v448
    %1160 = vmatpush1.bf16.msra.mxu0 %v447
    %1161 = vmatprep.subr.bf16.mxu0 0
    %1162 = vmatpush1.bf16.msra.mxu0 0
    %1163 = vmatprep.subr.bf16.mxu0 0
    %1164 = vmatpush1.bf16.msra.mxu0 0
    %1165 = vmatprep.subr.bf16.mxu0 0
    %1166 = vmatpush1.bf16.msra.mxu0 0
    %1167 = vmatprep.subr.bf16.mxu0 0
    %1168 = vmatpush1.bf16.msra.mxu0 0
    %1169 = vmatprep.subr.bf16.mxu0 0
    %1170 = vmatpush1.bf16.msra.mxu0 0
    %1171 = vmatprep.subr.bf16.mxu0 0
    %1172 = vmatpush1.bf16.msra.mxu0 0
    %1173 = vmatprep.subr.bf16.mxu0 0
    %1174 = vmatpush1.bf16.msra.mxu0 0
    %1175 = vmatprep.subr.bf16.mxu0 0
    %1176 = vmatpush1.bf16.msra.mxu0 0
    %1177 = vmatprep.mubr.bf16.mxu0 0
    %1178 = vmatmul.mubr.bf16.gmra.mrb[0].mxu0 %v1144
    %v1179 = vpop.f32.mrb[0].mxu0
    %v1180 = vadd.f32 0.0, %v1179
    %v1181 = vpop.f32.mrb[0].mxu0
    %v1182 = vadd.f32 0.0, %v1181
    %v1183 = vpop.f32.mrb[0].mxu0
    %v1184 = vpop.f32.mrb[0].mxu0
    %1185 = vdwg.mxu0
    %1186 = vmatprep.subr.bf16.mxu0 0
    %1187 = vmatpush1.bf16.msra.mxu0 %v428
    %1188 = vmatprep.subr.bf16.mxu0 0
    %1189 = vmatpush1.bf16.msra.mxu0 %v431
    %1190 = vmatprep.subr.bf16.mxu0 0
    %1191 = vmatpush1.bf16.msra.mxu0 %v434
    %1192 = vmatprep.subr.bf16.mxu0 0
    %1193 = vmatpush1.bf16.msra.mxu0 %v437
    %1194 = vmatprep.subr.bf16.mxu0 0
    %1195 = vmatpush1.bf16.msra.mxu0 %v440
    %1196 = vmatprep.subr.bf16.mxu0 0
    %1197 = vmatpush1.bf16.msra.mxu0 %v443
    %1198 = vmatprep.subr.bf16.mxu0 0
    %1199 = vmatpush1.bf16.msra.mxu0 %v446
    %1200 = vmatprep.subr.bf16.mxu0 0
    %1201 = vmatpush1.bf16.msra.mxu0 %v449
    %1202 = vmatprep.subr.bf16.mxu0 0
    %1203 = vmatpush1.bf16.msra.mxu0 0
    %1204 = vmatprep.subr.bf16.mxu0 0
    %1205 = vmatpush1.bf16.msra.mxu0 0
    %1206 = vmatprep.subr.bf16.mxu0 0
    %1207 = vmatpush1.bf16.msra.mxu0 0
    %1208 = vmatprep.subr.bf16.mxu0 0
    %1209 = vmatpush1.bf16.msra.mxu0 0
    %1210 = vmatprep.subr.bf16.mxu0 0
    %1211 = vmatpush1.bf16.msra.mxu0 0
    %1212 = vmatprep.subr.bf16.mxu0 0
    %1213 = vmatpush1.bf16.msra.mxu0 0
    %1214 = vmatprep.subr.bf16.mxu0 0
    %1215 = vmatpush1.bf16.msra.mxu0 0
    %1216 = vmatprep.subr.bf16.mxu0 0
    %1217 = vmatpush1.bf16.msra.mxu0 0
    %1218 = vmatprep.mubr.bf16.mxu0 0
    %1219 = vmatmul.mubr.bf16.gmra.mrb[0].mxu0 %v1144
    %v1220 = vpop.f32.mrb[0].mxu0
    %v1221 = vadd.f32 0.0, %v1220
    %v1222 = vpop.f32.mrb[0].mxu0
    %v1223 = vpop.f32.mrb[0].mxu0
    %v1224 = vpop.f32.mrb[0].mxu0
    %1225 = vdwg.mxu0
    %v1226 = vadd.f32 %v1141, %v1180
    %v1227 = vadd.f32 %v1142, %v1182
    %v1228 = vxor.u32 %v1226, 2147483648
    %v1229 = vxor.u32 %v1227, 2147483648
    %v1230 = vmul.f32 %v1228, 1.442695
    %v1231 = vpow.pop %v1230
    %v1232 = vmul.f32 %v1229, 1.442695
    %v1233 = vpow.pop %v1232
    %v1234 = vadd.f32 %v1231, 1.0
    %v1235 = vadd.f32 %v1233, 1.0
    %v1236 = vrcp.pop %v1234
    %v1237 = vmul.f32 1.0, %v1236
    %v1238 = vrcp.pop %v1235
    %v1239 = vmul.f32 1.0, %v1238
    %v1240 = vadd.f32 %v1221, %v336
    %v1241 = vmul.f32 %v1237, %v1240
    %v1242 = vadd.f32 %v1143, %v1241
    %v1243 = vtanh.pop %v1242
    %v1244 = vsub.f32 1.0, %v1239
    %v1245 = vmul.f32 %v1244, %v1243
    %v1246 = vmul.f32 %v1239, %v1135
    %v1247 = vadd.f32 %v1245, %v1246
    %s1248 = scalar_lea.vmem [#allocation4], 48
    %1249 = vst [vmem:[%s1248] sm:$0xff] %v1247
    %s1250 = smul.u32 7, 3
    %s1251 = smul.addr %s1250, 8
    %s1252 = scalar_lea.vmem [#allocation3], %s1251
    %v1253 = vld [vmem:[%s1252] sm:$0xff]
    %v1254 = vld [vmem:[%s1252 + $0x8] sm:$0xff]
    %v1255 = vld [vmem:[%s1252 + $0x10] sm:$0xff]
    %v1256 = vpack.c.bf16 %v1247, %v1247
    %1257 = vmatprep.subr.bf16.mxu0 %v427
    %1258 = vmatpush1.bf16.msra.mxu0 %v426
    %1259 = vmatprep.subr.bf16.mxu0 %v430
    %1260 = vmatpush1.bf16.msra.mxu0 %v429
    %1261 = vmatprep.subr.bf16.mxu0 %v433
    %1262 = vmatpush1.bf16.msra.mxu0 %v432
    %1263 = vmatprep.subr.bf16.mxu0 %v436
    %1264 = vmatpush1.bf16.msra.mxu0 %v435
    %1265 = vmatprep.subr.bf16.mxu0 %v439
    %1266 = vmatpush1.bf16.msra.mxu0 %v438
    %1267 = vmatprep.subr.bf16.mxu0 %v442
    %1268 = vmatpush1.bf16.msra.mxu0 %v441
    %1269 = vmatprep.subr.bf16.mxu0 %v445
    %1270 = vmatpush1.bf16.msra.mxu0 %v444
    %1271 = vmatprep.subr.bf16.mxu0 %v448
    %1272 = vmatpush1.bf16.msra.mxu0 %v447
    %1273 = vmatprep.subr.bf16.mxu0 0
    %1274 = vmatpush1.bf16.msra.mxu0 0
    %1275 = vmatprep.subr.bf16.mxu0 0
    %1276 = vmatpush1.bf16.msra.mxu0 0
    %1277 = vmatprep.subr.bf16.mxu0 0
    %1278 = vmatpush1.bf16.msra.mxu0 0
    %1279 = vmatprep.subr.bf16.mxu0 0
    %1280 = vmatpush1.bf16.msra.mxu0 0
    %1281 = vmatprep.subr.bf16.mxu0 0
    %1282 = vmatpush1.bf16.msra.mxu0 0
    %1283 = vmatprep.subr.bf16.mxu0 0
    %1284 = vmatpush1.bf16.msra.mxu0 0
    %1285 = vmatprep.subr.bf16.mxu0 0
    %1286 = vmatpush1.bf16.msra.mxu0 0
    %1287 = vmatprep.subr.bf16.mxu0 0
    %1288 = vmatpush1.bf16.msra.mxu0 0
    %1289 = vmatprep.mubr.bf16.mxu0 0
    %1290 = vmatmul.mubr.bf16.gmra.mrb[0].mxu0 %v1256
    %v1291 = vpop.f32.mrb[0].mxu0
    %v1292 = vadd.f32 0.0, %v1291
    %v1293 = vpop.f32.mrb[0].mxu0
    %v1294 = vadd.f32 0.0, %v1293
    %v1295 = vpop.f32.mrb[0].mxu0
    %v1296 = vpop.f32.mrb[0].mxu0
    %1297 = vdwg.mxu0
    %1298 = vmatprep.subr.bf16.mxu0 0
    %1299 = vmatpush1.bf16.msra.mxu0 %v428
    %1300 = vmatprep.subr.bf16.mxu0 0
    %1301 = vmatpush1.bf16.msra.mxu0 %v431
    %1302 = vmatprep.subr.bf16.mxu0 0
    %1303 = vmatpush1.bf16.msra.mxu0 %v434
    %1304 = vmatprep.subr.bf16.mxu0 0
    %1305 = vmatpush1.bf16.msra.mxu0 %v437
    %1306 = vmatprep.subr.bf16.mxu0 0
    %1307 = vmatpush1.bf16.msra.mxu0 %v440
    %1308 = vmatprep.subr.bf16.mxu0 0
    %1309 = vmatpush1.bf16.msra.mxu0 %v443
    %1310 = vmatprep.subr.bf16.mxu0 0
    %1311 = vmatpush1.bf16.msra.mxu0 %v446
    %1312 = vmatprep.subr.bf16.mxu0 0
    %1313 = vmatpush1.bf16.msra.mxu0 %v449
    %1314 = vmatprep.subr.bf16.mxu0 0
    %1315 = vmatpush1.bf16.msra.mxu0 0
    %1316 = vmatprep.subr.bf16.mxu0 0
    %1317 = vmatpush1.bf16.msra.mxu0 0
    %1318 = vmatprep.subr.bf16.mxu0 0
    %1319 = vmatpush1.bf16.msra.mxu0 0
    %1320 = vmatprep.subr.bf16.mxu0 0
    %1321 = vmatpush1.bf16.msra.mxu0 0
    %1322 = vmatprep.subr.bf16.mxu0 0
    %1323 = vmatpush1.bf16.msra.mxu0 0
    %1324 = vmatprep.subr.bf16.mxu0 0
    %1325 = vmatpush1.bf16.msra.mxu0 0
    %1326 = vmatprep.subr.bf16.mxu0 0
    %1327 = vmatpush1.bf16.msra.mxu0 0
    %1328 = vmatprep.subr.bf16.mxu0 0
    %1329 = vmatpush1.bf16.msra.mxu0 0
    %1330 = vmatprep.mubr.bf16.mxu0 0
    %1331 = vmatmul.mubr.bf16.gmra.mrb[0].mxu0 %v1256
    %v1332 = vpop.f32.mrb[0].mxu0
    %v1333 = vadd.f32 0.0, %v1332
    %v1334 = vpop.f32.mrb[0].mxu0
    %v1335 = vpop.f32.mrb[0].mxu0
    %v1336 = vpop.f32.mrb[0].mxu0
    %1337 = vdwg.mxu0
    %v1338 = vadd.f32 %v1253, %v1292
    %v1339 = vadd.f32 %v1254, %v1294
    %v1340 = vxor.u32 %v1338, 2147483648
    %v1341 = vxor.u32 %v1339, 2147483648
    %v1342 = vmul.f32 %v1340, 1.442695
    %v1343 = vpow.pop %v1342
    %v1344 = vmul.f32 %v1341, 1.442695
    %v1345 = vpow.pop %v1344
    %v1346 = vadd.f32 %v1343, 1.0
    %v1347 = vadd.f32 %v1345, 1.0
    %v1348 = vrcp.pop %v1346
    %v1349 = vmul.f32 1.0, %v1348
    %v1350 = vrcp.pop %v1347
    %v1351 = vmul.f32 1.0, %v1350
    %v1352 = vadd.f32 %v1333, %v336
    %v1353 = vmul.f32 %v1349, %v1352
    %v1354 = vadd.f32 %v1255, %v1353
    %v1355 = vtanh.pop %v1354
    %v1356 = vsub.f32 1.0, %v1351
    %v1357 = vmul.f32 %v1356, %v1355
    %v1358 = vmul.f32 %v1351, %v1247
    %v1359 = vadd.f32 %v1357, %v1358
    %s1360 = scalar_lea.vmem [#allocation4], 56
    %1361 = vst [vmem:[%s1360] sm:$0xff] %v1359
    %1362 = vst [vmem:[#allocation2] sm:$0xff] %v1359
    %v1363 = vld [vmem:[#allocation4] sm:$0xff]
    %v1364 = vld [vmem:[#allocation4 + $0x8] sm:$0xff]
    %v1365 = vld [vmem:[#allocation4 + $0x10] sm:$0xff]
    %v1366 = vld [vmem:[#allocation4 + $0x18] sm:$0xff]
    %v1367 = vld [vmem:[#allocation4 + $0x20] sm:$0xff]
    %v1368 = vld [vmem:[#allocation4 + $0x28] sm:$0xff]
    %v1369 = vld [vmem:[#allocation4 + $0x30] sm:$0xff]
    %v1370 = vld [vmem:[#allocation4 + $0x38] sm:$0xff]
    %v1371 = vpack.c.bf16 %v1364, %v1363
    %v1372 = vpack.c.bf16 %v1366, %v1365
    %v1373 = vpack.c.bf16 %v1368, %v1367
    %v1374 = vpack.c.bf16 %v1370, %v1369
    %v1375 = vld [vmem:[%s5] sm:$0xf]
    %v1376 = vld [vmem:[%s5 + $0x4] sm:$0xf]
    %v1377 = vld [vmem:[%s5 + $0x8] sm:$0xf]
    %v1378 = vld [vmem:[%s5 + $0xc] sm:$0xf]
    %v1379 = vld [vmem:[%s5 + $0x10] sm:$0xf]
    %v1380 = vld [vmem:[%s5 + $0x14] sm:$0xf]
    %v1381 = vld [vmem:[%s5 + $0x18] sm:$0xf]
    %v1382 = vld [vmem:[%s5 + $0x1c] sm:$0xf]
    %v1383 = vld [vmem:[%s5 + $0x20] sm:$0xf]
    %v1384 = vld [vmem:[%s5 + $0x24] sm:$0xf]
    %v1385 = vld [vmem:[%s5 + $0x28] sm:$0xf]
    %v1386 = vld [vmem:[%s5 + $0x2c] sm:$0xf]
    %v1387 = vld [vmem:[%s5 + $0x30] sm:$0xf]
    %v1388 = vld [vmem:[%s5 + $0x34] sm:$0xf]
    %v1389 = vld [vmem:[%s5 + $0x38] sm:$0xf]
    %v1390 = vld [vmem:[%s5 + $0x3c] sm:$0xf]
    %v1391 = vld [vmem:[#allocation9] sm:$0x1]
    %v1393 = vlaneseq
    %v1394 = vshrl.u32 %v1393, 7
    %v1395 = vsub.s32 0, %v1394
    %v1396 = vrot.slane %v1391, %v1395
    %v1414 = vunpack.c.l.b16 %v1375
    %v1415 = vunpack.c.l.b16 %v1376
    %v1416 = vunpack.c.l.b16 %v1377
    %v1417 = vunpack.c.l.b16 %v1378
    %v1418 = vunpack.c.l.b16 %v1379
    %v1419 = vunpack.c.l.b16 %v1380
    %v1420 = vunpack.c.l.b16 %v1381
    %v1421 = vunpack.c.l.b16 %v1382
    %v1422 = vunpack.c.l.b16 %v1383
    %v1423 = vunpack.c.l.b16 %v1384
    %v1424 = vunpack.c.l.b16 %v1385
    %v1425 = vunpack.c.l.b16 %v1386
    %v1426 = vunpack.c.l.b16 %v1387
    %v1427 = vunpack.c.l.b16 %v1388
    %v1428 = vunpack.c.l.b16 %v1389
    %v1429 = vunpack.c.l.b16 %v1390
    %v1430 = vpack.c.b16 %v1415, %v1414
    %v1431 = vpack.c.b16 %v1417, %v1416
    %v1432 = vpack.c.b16 %v1419, %v1418
    %v1433 = vpack.c.b16 %v1421, %v1420
    %v1434 = vpack.c.b16 %v1423, %v1422
    %v1435 = vpack.c.b16 %v1425, %v1424
    %v1436 = vpack.c.b16 %v1427, %v1426
    %v1437 = vpack.c.b16 %v1429, %v1428
    %1446 = vmatprep.subr.bf16.mxu0 0
    %1447 = vmatpush1.bf16.msra.mxu0 %v1430
    %1448 = vmatprep.subr.bf16.mxu0 0
    %1449 = vmatpush1.bf16.msra.mxu0 %v1431
    %1450 = vmatprep.subr.bf16.mxu0 0
    %1451 = vmatpush1.bf16.msra.mxu0 %v1432
    %1452 = vmatprep.subr.bf16.mxu0 0
    %1453 = vmatpush1.bf16.msra.mxu0 %v1433
    %1454 = vmatprep.subr.bf16.mxu0 0
    %1455 = vmatpush1.bf16.msra.mxu0 %v1434
    %1456 = vmatprep.subr.bf16.mxu0 0
    %1457 = vmatpush1.bf16.msra.mxu0 %v1435
    %1458 = vmatprep.subr.bf16.mxu0 0
    %1459 = vmatpush1.bf16.msra.mxu0 %v1436
    %1460 = vmatprep.subr.bf16.mxu0 0
    %1461 = vmatpush1.bf16.msra.mxu0 %v1437
    %1462 = vmatprep.subr.bf16.mxu0 0
    %1463 = vmatpush1.bf16.msra.mxu0 0
    %1464 = vmatprep.subr.bf16.mxu0 0
    %1465 = vmatpush1.bf16.msra.mxu0 0
    %1466 = vmatprep.subr.bf16.mxu0 0
    %1467 = vmatpush1.bf16.msra.mxu0 0
    %1468 = vmatprep.subr.bf16.mxu0 0
    %1469 = vmatpush1.bf16.msra.mxu0 0
    %1470 = vmatprep.subr.bf16.mxu0 0
    %1471 = vmatpush1.bf16.msra.mxu0 0
    %1472 = vmatprep.subr.bf16.mxu0 0
    %1473 = vmatpush1.bf16.msra.mxu0 0
    %1474 = vmatprep.subr.bf16.mxu0 0
    %1475 = vmatpush1.bf16.msra.mxu0 0
    %1476 = vmatprep.subr.bf16.mxu0 0
    %1477 = vmatpush1.bf16.msra.mxu0 0
    %1478 = vmatprep.mubr.bf16.mxu0 0
    %1479 = vmatmul.mubr.bf16.gmra.mrb[0].mxu0 %v1371
    %v1480 = vpop.f32.mrb[0].mxu0
    %v1481 = vadd.f32 %v1396, %v1480
    %v1482 = vpop.f32.mrb[0].mxu0
    %v1483 = vpop.f32.mrb[0].mxu0
    %v1484 = vadd.f32 %v1396, %v1483
    %v1485 = vpop.f32.mrb[0].mxu0
    %1486 = vmatprep.mubr.bf16.mxu0 0
    %1487 = vmatmul.mubr.bf16.gmra.mrb[0].mxu0 %v1372
    %v1488 = vpop.f32.mrb[0].mxu0
    %v1489 = vadd.f32 %v1396, %v1488
    %v1490 = vpop.f32.mrb[0].mxu0
    %v1491 = vpop.f32.mrb[0].mxu0
    %v1492 = vadd.f32 %v1396, %v1491
    %v1493 = vpop.f32.mrb[0].mxu0
    %1494 = vmatprep.mubr.bf16.mxu0 0
    %1495 = vmatmul.mubr.bf16.gmra.mrb[0].mxu0 %v1373
    %v1496 = vpop.f32.mrb[0].mxu0
    %v1497 = vadd.f32 %v1396, %v1496
    %v1498 = vpop.f32.mrb[0].mxu0
    %v1499 = vpop.f32.mrb[0].mxu0
    %v1500 = vadd.f32 %v1396, %v1499
    %v1501 = vpop.f32.mrb[0].mxu0
    %1502 = vmatprep.mubr.bf16.mxu0 0
    %1503 = vmatmul.mubr.bf16.gmra.mrb[0].mxu0 %v1374
    %v1504 = vpop.f32.mrb[0].mxu0
    %v1505 = vadd.f32 %v1396, %v1504
    %v1506 = vpop.f32.mrb[0].mxu0
    %v1507 = vpop.f32.mrb[0].mxu0
    %v1508 = vadd.f32 %v1396, %v1507
    %v1509 = vpop.f32.mrb[0].mxu0
    %1510 = vdwg.mxu0
    %vm1511 = vcmask 130048
    %1512 = vst.msk [vmem:[%s7] sm:$0xff] %vm1511, %v1481
    %1513 = vst.msk [vmem:[%s7 + $0x8] sm:$0xff] %vm1511, %v1484
    %1514 = vst.msk [vmem:[%s7 + $0x10] sm:$0xff] %vm1511, %v1489
    %1515 = vst.msk [vmem:[%s7 + $0x18] sm:$0xff] %vm1511, %v1492
    %1516 = vst.msk [vmem:[%s7 + $0x20] sm:$0xff] %vm1511, %v1497
    %1517 = vst.msk [vmem:[%s7 + $0x28] sm:$0xff] %vm1511, %v1500
    %1518 = vst.msk [vmem:[%s7 + $0x30] sm:$0xff] %vm1511, %v1505
    %1519 = vst.msk [vmem:[%s7 + $0x38] sm:$0xff] %vm1511, %v1508
    // Predicated region
    $region46: #{birnn_forward.1} parent=1 // pred_check
      _
    $region47: #{birnn_forward.1} parent=1 // pred_check_branch
      %1521 = sbr.rel (0) target = $region49
    $region48: #{birnn_forward.1} parent=1 // pred_region
      _
    $region49: #{birnn_forward.1} parent=1 // pred_fallthru
      _
    // Predicated region
    $region50: #{birnn_forward.1} parent=1 // pred_check
      _
    $region51: #{birnn_forward.1} parent=1 // pred_check_branch
      %1523 = sbr.rel (0) target = $region53
    $region52: #{birnn_forward.1} parent=1 // pred_region
      _
    $region53: #{birnn_forward.1} parent=1 // pred_fallthru
      _
    %1524 = vsyncpa [#allocation6], 1
    %1525 = vsyncpa [#allocation8], 1

</llo_original>
